<compile_context>
chip_gen: v7x
topology: tpu7x:2x2x1
jax: 0.10.0
libtpu: 0.0.40
codegen_flags: <defaults>
</compile_context>

<pallas_src>
import functools

import jax
import jax.numpy as jnp
from jax.experimental import pallas as pl
from jax.experimental.pallas import tpu as pltpu

# Padded, lane-aligned dims.
D_IN_RAW, D_IN = 784, 896      # 7 * 128
D_HID_RAW, D_HID = 300, 384    # 3 * 128
D_OUT_RAW, D_OUT = 10, 128     # 1 * 128
NEG_BIG = -1e30                # "minus infinity" for padded logit columns


def _round_up(x, m):
    return ((x + m - 1) // m) * m


def _netfull_kernel(x_ref, w1_ref, b1_ref, w2_ref, b2_ref, o_ref):
    # x_ref:  (TM, 896)  bf16
    # w1_ref: (896, 384) bf16      b1_ref: (1, 384) f32
    # w2_ref: (384, 128) bf16      b2_ref: (1, 128) f32 (-1e30 in cols 10..127)
    # o_ref:  (TM, 128)  f32
    x = x_ref[...]

    # layer1 (MXU, bf16 in / f32 accumulate) + bias + tanh (f32 on EUP)
    h = jnp.dot(x, w1_ref[...], preferred_element_type=jnp.float32)
    h = jnp.tanh(h + b1_ref[...])

    # layer2 (MXU, bf16 in / f32 accumulate) + bias (padded cols -> ~-1e30)
    logits = jnp.dot(h.astype(w2_ref.dtype), w2_ref[...],
                     preferred_element_type=jnp.float32) + b2_ref[...]

    # log_softmax over the padded 128-wide row (exact for the real 10 columns:
    # exp(-1e30 - m) underflows to 0 and does not touch the denominator).
    m = jnp.max(logits, axis=-1, keepdims=True)
    z = logits - m
    lse = jnp.log(jnp.sum(jnp.exp(z), axis=-1, keepdims=True))
    o_ref[...] = (z - lse).astype(o_ref.dtype)


@functools.partial(jax.jit, static_argnames=("tm",))
def netfull_forward(x_nchw, w1, b1, w2, b2, *, tm=256):
    """x_nchw: (B, 1, 28, 28) float32 -> (B, 10) f32 log-probs.

    w1: (784, 300), b1: (300,), w2: (300, 10), b2: (10,)  (in, out) layout.
    """
    B = x_nchw.shape[0]
    x = x_nchw.reshape(B, -1)  # (B, 784) — mirrors x.view(B, -1)

    # --- tile-size / batch padding ------------------------------------------
    if B <= tm:
        TM = _round_up(max(B, 1), 16)   # single step; 16 = bf16 sublane pack
    else:
        TM = tm
    PB = _round_up(B, TM)

    # --- lane-aligned, numerically-exact padding -----------------------------
    # x: zero-pad features 784->896 and batch B->PB. Cast to bf16 for the MXU.
    x_p = jnp.zeros((PB, D_IN), jnp.bfloat16).at[:B, :D_IN_RAW].set(
        x.astype(jnp.bfloat16))
    # w1: zero-pad (784,300)->(896,384). Zero rows/cols contribute nothing.
    w1_p = jnp.zeros((D_IN, D_HID), jnp.bfloat16).at[:D_IN_RAW, :D_HID_RAW].set(
        w1.astype(jnp.bfloat16))
    # b1: zero-pad -> tanh(0)=0 in padded hidden cols.
    b1_p = jnp.zeros((1, D_HID), jnp.float32).at[0, :D_HID_RAW].set(b1)
    # w2: zero-pad (300,10)->(384,128). Zero hidden rows + zero output cols.
    w2_p = jnp.zeros((D_HID, D_OUT), jnp.bfloat16).at[:D_HID_RAW, :D_OUT_RAW].set(
        w2.astype(jnp.bfloat16))
    # b2: -1e30 in padded output columns so they underflow in the softmax.
    b2_p = jnp.full((1, D_OUT), NEG_BIG, jnp.float32).at[0, :D_OUT_RAW].set(b2)

    grid = (PB // TM,)

    # --- VMEM budget (double-buffered x/out + resident weights) --------------
    vmem_bytes = (2 * TM * D_IN * 2          # x, bf16, 2 buffers
                  + D_IN * D_HID * 2         # w1 resident (bf16)
                  + D_HID * D_OUT * 2        # w2 resident (bf16)
                  + (D_HID + D_OUT) * 4      # biases (f32)
                  + 2 * TM * D_OUT * 4)      # out, f32, 2 buffers
    vmem_limit = max(8 * 1024 * 1024, 2 * vmem_bytes)  # generous headroom

    cost = pl.CostEstimate(
        flops=2 * PB * (D_IN * D_HID + D_HID * D_OUT),
        transcendentals=PB * (D_HID + D_OUT),            # tanh + exp
        bytes_accessed=(PB * D_IN * 2 + D_IN * D_HID * 2 + D_HID * D_OUT * 2
                        + (D_HID + D_OUT) * 4 + PB * D_OUT * 4),
    )

    out = pl.pallas_call(
        _netfull_kernel,
        out_shape=jax.ShapeDtypeStruct((PB, D_OUT), jnp.float32),
        grid=grid,
        in_specs=[
            pl.BlockSpec((TM, D_IN), lambda i: (i, 0)),       # x: tiled over batch
            pl.BlockSpec((D_IN, D_HID), lambda i: (0, 0)),    # w1: VMEM-resident
            pl.BlockSpec((1, D_HID), lambda i: (0, 0)),       # b1: resident
            pl.BlockSpec((D_HID, D_OUT), lambda i: (0, 0)),   # w2: resident
            pl.BlockSpec((1, D_OUT), lambda i: (0, 0)),       # b2: resident
        ],
        out_specs=pl.BlockSpec((TM, D_OUT), lambda i: (i, 0)),
        compiler_params=pltpu.CompilerParams(
            dimension_semantics=("parallel",),
            vmem_limit_bytes=int(vmem_limit),
        ),
        cost_estimate=cost,
    )(x_p, w1_p, b1_p, w2_p, b2_p)

    # Strip batch and output-column padding (lane-dense store inside kernel).
    return out[:B, :D_OUT_RAW]


def init_params(key):
    """Deterministic init matching nn.Linear shapes (stored transposed: (in, out))."""
    k1, k2, k3, k4 = jax.random.split(key, 4)
    lim1 = 1.0 / jnp.sqrt(784.0)
    lim2 = 1.0 / jnp.sqrt(300.0)
    w1 = jax.random.uniform(k1, (784, 300), jnp.float32, -lim1, lim1)
    b1 = jax.random.uniform(k2, (300,), jnp.float32, -lim1, lim1)
    w2 = jax.random.uniform(k3, (300, 10), jnp.float32, -lim2, lim2)
    b2 = jax.random.uniform(k4, (10,), jnp.float32, -lim2, lim2)
    return w1, b1, w2, b2


if __name__ == "__main__":
    key = jax.random.PRNGKey(0)
    kx, kp = jax.random.split(key)

    # MNIST-like input: batch=2, NCHW (2, 1, 28, 28)
    B = 2
    x = jax.random.normal(kx, (B, 1, 28, 28), jnp.float32)
    w1, b1, w2, b2 = init_params(kp)

    out = netfull_forward(x, w1, b1, w2, b2)
    out = jax.block_until_ready(out)
    assert out.shape == (B, 10)

    # Reference in plain JAX with the same bf16-operand / f32-accumulate math.
    xf = x.reshape(B, -1)
    h_ref = jnp.tanh(
        jnp.dot(xf.astype(jnp.bfloat16), w1.astype(jnp.bfloat16),
                preferred_element_type=jnp.float32) + b1)
    logits_ref = jnp.dot(h_ref.astype(jnp.bfloat16), w2.astype(jnp.bfloat16),
                         preferred_element_type=jnp.float32) + b2
    ref = jax.nn.log_softmax(logits_ref, axis=1)
    assert jnp.allclose(out, ref, atol=1e-3, rtol=1e-3), "mismatch vs bf16 reference"

    # Sanity vs full-f32 math (looser: bf16 operand rounding).
    ref_f32 = jax.nn.log_softmax(jnp.tanh(xf @ w1 + b1) @ w2 + b2, axis=1)
    assert jnp.allclose(out, ref_f32, atol=5e-2, rtol=5e-2), "mismatch vs f32 reference"

    print("KERNEL_OK")
</pallas_src>

<mosaic_0001>
module attributes {stable_mosaic.version = 11 : i64} {
  func.func @_netfull_kernel(%arg0: i32, %arg1: memref<16x896xbf16, #tpu.memory_space<vmem>>, %arg2: memref<896x384xbf16, #tpu.memory_space<vmem>>, %arg3: memref<1x384xf32, #tpu.memory_space<vmem>>, %arg4: memref<384x128xbf16, #tpu.memory_space<vmem>>, %arg5: memref<1x128xf32, #tpu.memory_space<vmem>>, %arg6: memref<16x128xf32, #tpu.memory_space<vmem>>) attributes {dimension_semantics = [#tpu.dimension_semantics<parallel>], iteration_bounds = array<i64: 1>, scalar_prefetch = 0 : i64, scratch_operands = 0 : i64, tpu.core_type = #tpu.core_type<tc>, window_params = [{transform_indices = @transform_0, window_bounds = array<i64: 16, 896>}, {pipeline_mode = #tpu.pipeline_mode<synchronous>, transform_indices = @transform_1, window_bounds = array<i64: 896, 384>}, {pipeline_mode = #tpu.pipeline_mode<synchronous>, transform_indices = @transform_2, window_bounds = array<i64: 1, 384>}, {pipeline_mode = #tpu.pipeline_mode<synchronous>, transform_indices = @transform_3, window_bounds = array<i64: 384, 128>}, {pipeline_mode = #tpu.pipeline_mode<synchronous>, transform_indices = @transform_4, window_bounds = array<i64: 1, 128>}, {transform_indices = @transform_5, window_bounds = array<i64: 16, 128>}]} {
    %c0 = arith.constant 0 : index
    %c0_0 = arith.constant 0 : index
    %0 = vector.load %arg1[%c0, %c0_0] : memref<16x896xbf16, #tpu.memory_space<vmem>>, vector<16x896xbf16>
    %c0_1 = arith.constant 0 : index
    %c0_2 = arith.constant 0 : index
    %1 = vector.load %arg2[%c0_1, %c0_2] : memref<896x384xbf16, #tpu.memory_space<vmem>>, vector<896x384xbf16>
    %cst = arith.constant dense<0.000000e+00> : vector<16x384xf32>
    %2 = tpu.matmul %0, %1, %cst {dimension_numbers = #tpu.dot_dimension_numbers<[1], [0], [0], [1], [0, 0, 1, 1], [], []>} : vector<16x896xbf16>, vector<896x384xbf16>, vector<16x384xf32> -> vector<16x384xf32>
    %c0_3 = arith.constant 0 : index
    %c0_4 = arith.constant 0 : index
    %3 = vector.load %arg3[%c0_3, %c0_4] : memref<1x384xf32, #tpu.memory_space<vmem>>, vector<1x384xf32>
    %4 = vector.broadcast %3 : vector<1x384xf32> to vector<16x384xf32>
    %5 = arith.addf %2, %4 : vector<16x384xf32>
    %6 = math.tanh %5 : vector<16x384xf32>
    %7 = arith.truncf %6 : vector<16x384xf32> to vector<16x384xbf16>
    %c0_5 = arith.constant 0 : index
    %c0_6 = arith.constant 0 : index
    %8 = vector.load %arg4[%c0_5, %c0_6] : memref<384x128xbf16, #tpu.memory_space<vmem>>, vector<384x128xbf16>
    %cst_7 = arith.constant dense<0.000000e+00> : vector<16x128xf32>
    %9 = tpu.matmul %7, %8, %cst_7 {dimension_numbers = #tpu.dot_dimension_numbers<[1], [0], [0], [1], [0, 0, 1, 1], [], []>} : vector<16x384xbf16>, vector<384x128xbf16>, vector<16x128xf32> -> vector<16x128xf32>
    %c0_8 = arith.constant 0 : index
    %c0_9 = arith.constant 0 : index
    %10 = vector.load %arg5[%c0_8, %c0_9] : memref<1x128xf32, #tpu.memory_space<vmem>>, vector<1x128xf32>
    %11 = vector.broadcast %10 : vector<1x128xf32> to vector<16x128xf32>
    %12 = arith.addf %9, %11 : vector<16x128xf32>
    %cst_10 = arith.constant dense<0xFF800000> : vector<16xf32>
    %13 = vector.multi_reduction <maximumf>, %12, %cst_10 [1] : vector<16x128xf32> to vector<16xf32>
    %14 = vector.shape_cast %13 : vector<16xf32> to vector<16x1xf32>
    %15 = vector.broadcast %14 : vector<16x1xf32> to vector<16x128xf32>
    %16 = arith.subf %12, %15 : vector<16x128xf32>
    %17 = math.exp %16 : vector<16x128xf32>
    %cst_11 = arith.constant dense<0.000000e+00> : vector<16xf32>
    %18 = vector.multi_reduction <add>, %17, %cst_11 [1] : vector<16x128xf32> to vector<16xf32>
    %19 = vector.shape_cast %18 : vector<16xf32> to vector<16x1xf32>
    %20 = math.log %19 : vector<16x1xf32>
    %21 = vector.broadcast %20 : vector<16x1xf32> to vector<16x128xf32>
    %22 = arith.subf %16, %21 : vector<16x128xf32>
    %c0_12 = arith.constant 0 : index
    %c0_13 = arith.constant 0 : index
    %23 = vector.load %arg6[%c0_12, %c0_13] : memref<16x128xf32, #tpu.memory_space<vmem>>, vector<16x128xf32>
    tpu.vector_store %arg6[%c0_12, %c0_13], %22 {strides = array<i32>} : memref<16x128xf32, #tpu.memory_space<vmem>>, vector<16x128xf32>,
    return
  }
  func.func @transform_0(%arg0: i32) -> (i32, i32) {
    %c0_i32 = arith.constant 0 : i32
    %c0_i32_0 = arith.constant 0 : i32
    return %arg0, %c0_i32 : i32, i32
  }
  func.func @transform_1(%arg0: i32) -> (i32, i32) {
    %c0_i32 = arith.constant 0 : i32
    %c0_i32_0 = arith.constant 0 : i32
    %c0_i32_1 = arith.constant 0 : i32
    return %c0_i32, %c0_i32_0 : i32, i32
  }
  func.func @transform_2(%arg0: i32) -> (i32, i32) {
    %c0_i32 = arith.constant 0 : i32
    %c0_i32_0 = arith.constant 0 : i32
    %c0_i32_1 = arith.constant 0 : i32
    return %c0_i32, %c0_i32_0 : i32, i32
  }
  func.func @transform_3(%arg0: i32) -> (i32, i32) {
    %c0_i32 = arith.constant 0 : i32
    %c0_i32_0 = arith.constant 0 : i32
    %c0_i32_1 = arith.constant 0 : i32
    return %c0_i32, %c0_i32_0 : i32, i32
  }
  func.func @transform_4(%arg0: i32) -> (i32, i32) {
    %c0_i32 = arith.constant 0 : i32
    %c0_i32_0 = arith.constant 0 : i32
    %c0_i32_1 = arith.constant 0 : i32
    return %c0_i32, %c0_i32_0 : i32, i32
  }
  func.func @transform_5(%arg0: i32) -> (i32, i32) {
    %c0_i32 = arith.constant 0 : i32
    %c0_i32_0 = arith.constant 0 : i32
    return %arg0, %c0_i32 : i32, i32
  }
}

</mosaic_0001>

<llo_original>
// kernel: netfull_forward.1
$region0: #{netfull_forward.1}
  #allocation0 [shape = 'u32[]', space=smem, size = 0x4, offset = 0x4, fixed_abs, tag = 'smem constant byte address 0x4 - core index']
  #allocation1 [shape = 'u32[144,128]{1,0:T(1,128)}', space=vmem, size = 0x12000, scoped, tag = 'internal scratch']
  %s0 = inlined_call_operand.vmem [shape: bf16[16,896], index: 0, kind: input, shape index: {}]
  %s1 = inlined_call_operand.vmem [shape: bf16[896,384], index: 1, kind: input, shape index: {}]
  %s2 = inlined_call_operand.vmem [shape: f32[1,384], index: 2, kind: input, shape index: {}]
  %s3 = inlined_call_operand.vmem [shape: bf16[384,128], index: 3, kind: input, shape index: {}]
  %s4 = inlined_call_operand.vmem [shape: f32[1,128], index: 4, kind: input, shape index: {}]
  %s5 = inlined_call_operand.vmem [shape: f32[16,128], index: 5, kind: output, shape index: {}]
  %s6 = sld [smem:[#allocation0]]
  $region30: #{netfull_forward.1} parent=0
    _
  %s8 = ssub.s32 1, %s6
  %s9 = scalar_select 0, %s8, %s6
  // Predicated region
  $region2: #{netfull_forward.1} parent=0 // pred_check
    _
  $region3: #{netfull_forward.1} parent=0 // pred_check_branch
    %11 = sbr.rel (0) target = $region5
  $region4: #{netfull_forward.1} parent=0 // pred_region
    _
  $region5: #{netfull_forward.1} parent=0 // pred_fallthru
    _
  // Predicated region
  $region6: #{netfull_forward.1} parent=0 // pred_check
    _
  $region7: #{netfull_forward.1} parent=0 // pred_check_branch
    %13 = sbr.rel (0) target = $region9
  $region8: #{netfull_forward.1} parent=0 // pred_region
    _
  $region9: #{netfull_forward.1} parent=0 // pred_fallthru
    _
  // Predicated region
  $region10: #{netfull_forward.1} parent=0 // pred_check
    _
  $region11: #{netfull_forward.1} parent=0 // pred_check_branch
    %15 = sbr.rel (0) target = $region13
  $region12: #{netfull_forward.1} parent=0 // pred_region
    _
  $region13: #{netfull_forward.1} parent=0 // pred_fallthru
    _
  // Predicated region
  $region14: #{netfull_forward.1} parent=0 // pred_check
    _
  $region15: #{netfull_forward.1} parent=0 // pred_check_branch
    %17 = sbr.rel (0) target = $region17
  $region16: #{netfull_forward.1} parent=0 // pred_region
    _
  $region17: #{netfull_forward.1} parent=0 // pred_fallthru
    _
  // Predicated region
  $region18: #{netfull_forward.1} parent=0 // pred_check
    _
  $region19: #{netfull_forward.1} parent=0 // pred_check_branch
    %19 = sbr.rel (0) target = $region21
  $region20: #{netfull_forward.1} parent=0 // pred_region
    _
  $region21: #{netfull_forward.1} parent=0 // pred_fallthru
    _
  %v21 = vld [vmem:[%s0] sm:$0xff]
  %v22 = vld [vmem:[%s0 + $0x8] sm:$0xff]
  %v23 = vld [vmem:[%s0 + $0x10] sm:$0xff]
  %v24 = vld [vmem:[%s0 + $0x18] sm:$0xf]
  %v25 = vld [vmem:[%s0 + $0x1c] sm:$0xff]
  %v26 = vld [vmem:[%s0 + $0x24] sm:$0xff]
  %v27 = vld [vmem:[%s0 + $0x2c] sm:$0xff]
  %v28 = vld [vmem:[%s0 + $0x34] sm:$0xf]
  %v29 = vld [vmem:[%s1] sm:$0xff]
  %v30 = vld [vmem:[%s1 + $0x8] sm:$0xf]
  %v31 = vld [vmem:[%s1 + $0xc] sm:$0xff]
  %v32 = vld [vmem:[%s1 + $0x14] sm:$0xf]
  %v33 = vld [vmem:[%s1 + $0x18] sm:$0xff]
  %v34 = vld [vmem:[%s1 + $0x20] sm:$0xf]
  %v35 = vld [vmem:[%s1 + $0x24] sm:$0xff]
  %v36 = vld [vmem:[%s1 + $0x2c] sm:$0xf]
  %v37 = vld [vmem:[%s1 + $0x30] sm:$0xff]
  %v38 = vld [vmem:[%s1 + $0x38] sm:$0xf]
  %v39 = vld [vmem:[%s1 + $0x3c] sm:$0xff]
  %v40 = vld [vmem:[%s1 + $0x44] sm:$0xf]
  %v41 = vld [vmem:[%s1 + $0x48] sm:$0xff]
  %v42 = vld [vmem:[%s1 + $0x50] sm:$0xf]
  %v43 = vld [vmem:[%s1 + $0x54] sm:$0xff]
  %v44 = vld [vmem:[%s1 + $0x5c] sm:$0xf]
  %v45 = vld [vmem:[%s1 + $0x60] sm:$0xff]
  %v46 = vld [vmem:[%s1 + $0x68] sm:$0xf]
  %v47 = vld [vmem:[%s1 + $0x6c] sm:$0xff]
  %v48 = vld [vmem:[%s1 + $0x74] sm:$0xf]
  %v49 = vld [vmem:[%s1 + $0x78] sm:$0xff]
  %v50 = vld [vmem:[%s1 + $0x80] sm:$0xf]
  %v51 = vld [vmem:[%s1 + $0x84] sm:$0xff]
  %v52 = vld [vmem:[%s1 + $0x8c] sm:$0xf]
  %v53 = vld [vmem:[%s1 + $0x90] sm:$0xff]
  %v54 = vld [vmem:[%s1 + $0x98] sm:$0xf]
  %v55 = vld [vmem:[%s1 + $0x9c] sm:$0xff]
  %v56 = vld [vmem:[%s1 + $0xa4] sm:$0xf]
  %v57 = vld [vmem:[%s1 + $0xa8] sm:$0xff]
  %v58 = vld [vmem:[%s1 + $0xb0] sm:$0xf]
  %v59 = vld [vmem:[%s1 + $0xb4] sm:$0xff]
  %v60 = vld [vmem:[%s1 + $0xbc] sm:$0xf]
  %v61 = vld [vmem:[%s1 + $0xc0] sm:$0xff]
  %v62 = vld [vmem:[%s1 + $0xc8] sm:$0xf]
  %v63 = vld [vmem:[%s1 + $0xcc] sm:$0xff]
  %v64 = vld [vmem:[%s1 + $0xd4] sm:$0xf]
  %v65 = vld [vmem:[%s1 + $0xd8] sm:$0xff]
  %v66 = vld [vmem:[%s1 + $0xe0] sm:$0xf]
  %v67 = vld [vmem:[%s1 + $0xe4] sm:$0xff]
  %v68 = vld [vmem:[%s1 + $0xec] sm:$0xf]
  %v69 = vld [vmem:[%s1 + $0xf0] sm:$0xff]
  %v70 = vld [vmem:[%s1 + $0xf8] sm:$0xf]
  %v71 = vld [vmem:[%s1 + $0xfc] sm:$0xff]
  %v72 = vld [vmem:[%s1 + $0x104] sm:$0xf]
  %v73 = vld [vmem:[%s1 + $0x108] sm:$0xff]
  %v74 = vld [vmem:[%s1 + $0x110] sm:$0xf]
  %v75 = vld [vmem:[%s1 + $0x114] sm:$0xff]
  %v76 = vld [vmem:[%s1 + $0x11c] sm:$0xf]
  %v77 = vld [vmem:[%s1 + $0x120] sm:$0xff]
  %v78 = vld [vmem:[%s1 + $0x128] sm:$0xf]
  %v79 = vld [vmem:[%s1 + $0x12c] sm:$0xff]
  %v80 = vld [vmem:[%s1 + $0x134] sm:$0xf]
  %v81 = vld [vmem:[%s1 + $0x138] sm:$0xff]
  %v82 = vld [vmem:[%s1 + $0x140] sm:$0xf]
  %v83 = vld [vmem:[%s1 + $0x144] sm:$0xff]
  %v84 = vld [vmem:[%s1 + $0x14c] sm:$0xf]
  %v85 = vld [vmem:[%s1 + $0x150] sm:$0xff]
  %v86 = vld [vmem:[%s1 + $0x158] sm:$0xf]
  %v87 = vld [vmem:[%s1 + $0x15c] sm:$0xff]
  %v88 = vld [vmem:[%s1 + $0x164] sm:$0xf]
  %v89 = vld [vmem:[%s1 + $0x168] sm:$0xff]
  %v90 = vld [vmem:[%s1 + $0x170] sm:$0xf]
  %v91 = vld [vmem:[%s1 + $0x174] sm:$0xff]
  %v92 = vld [vmem:[%s1 + $0x17c] sm:$0xf]
  %v93 = vld [vmem:[%s1 + $0x180] sm:$0xff]
  %v94 = vld [vmem:[%s1 + $0x188] sm:$0xf]
  %v95 = vld [vmem:[%s1 + $0x18c] sm:$0xff]
  %v96 = vld [vmem:[%s1 + $0x194] sm:$0xf]
  %v97 = vld [vmem:[%s1 + $0x198] sm:$0xff]
  %v98 = vld [vmem:[%s1 + $0x1a0] sm:$0xf]
  %v99 = vld [vmem:[%s1 + $0x1a4] sm:$0xff]
  %v100 = vld [vmem:[%s1 + $0x1ac] sm:$0xf]
  %v101 = vld [vmem:[%s1 + $0x1b0] sm:$0xff]
  %v102 = vld [vmem:[%s1 + $0x1b8] sm:$0xf]
  %v103 = vld [vmem:[%s1 + $0x1bc] sm:$0xff]
  %v104 = vld [vmem:[%s1 + $0x1c4] sm:$0xf]
  %v105 = vld [vmem:[%s1 + $0x1c8] sm:$0xff]
  %v106 = vld [vmem:[%s1 + $0x1d0] sm:$0xf]
  %v107 = vld [vmem:[%s1 + $0x1d4] sm:$0xff]
  %v108 = vld [vmem:[%s1 + $0x1dc] sm:$0xf]
  %v109 = vld [vmem:[%s1 + $0x1e0] sm:$0xff]
  %v110 = vld [vmem:[%s1 + $0x1e8] sm:$0xf]
  %v111 = vld [vmem:[%s1 + $0x1ec] sm:$0xff]
  %v112 = vld [vmem:[%s1 + $0x1f4] sm:$0xf]
  %v113 = vld [vmem:[%s1 + $0x1f8] sm:$0xff]
  %v114 = vld [vmem:[%s1 + $0x200] sm:$0xf]
  %v115 = vld [vmem:[%s1 + $0x204] sm:$0xff]
  %v116 = vld [vmem:[%s1 + $0x20c] sm:$0xf]
  %v117 = vld [vmem:[%s1 + $0x210] sm:$0xff]
  %v118 = vld [vmem:[%s1 + $0x218] sm:$0xf]
  %v119 = vld [vmem:[%s1 + $0x21c] sm:$0xff]
  %v120 = vld [vmem:[%s1 + $0x224] sm:$0xf]
  %v121 = vld [vmem:[%s1 + $0x228] sm:$0xff]
  %v122 = vld [vmem:[%s1 + $0x230] sm:$0xf]
  %v123 = vld [vmem:[%s1 + $0x234] sm:$0xff]
  %v124 = vld [vmem:[%s1 + $0x23c] sm:$0xf]
  %v125 = vld [vmem:[%s1 + $0x240] sm:$0xff]
  %v126 = vld [vmem:[%s1 + $0x248] sm:$0xf]
  %v127 = vld [vmem:[%s1 + $0x24c] sm:$0xff]
  %v128 = vld [vmem:[%s1 + $0x254] sm:$0xf]
  %v129 = vld [vmem:[%s1 + $0x258] sm:$0xff]
  %v130 = vld [vmem:[%s1 + $0x260] sm:$0xf]
  %v131 = vld [vmem:[%s1 + $0x264] sm:$0xff]
  %v132 = vld [vmem:[%s1 + $0x26c] sm:$0xf]
  %v133 = vld [vmem:[%s1 + $0x270] sm:$0xff]
  %v134 = vld [vmem:[%s1 + $0x278] sm:$0xf]
  %v135 = vld [vmem:[%s1 + $0x27c] sm:$0xff]
  %v136 = vld [vmem:[%s1 + $0x284] sm:$0xf]
  %v137 = vld [vmem:[%s1 + $0x288] sm:$0xff]
  %v138 = vld [vmem:[%s1 + $0x290] sm:$0xf]
  %v139 = vld [vmem:[%s1 + $0x294] sm:$0xff]
  %v140 = vld [vmem:[%s1 + $0x29c] sm:$0xf]
  %v141 = vld [vmem:[%s1 + $0x2a0] sm:$0xff]
  %v142 = vld [vmem:[%s1 + $0x2a8] sm:$0xf]
  %v143 = vld [vmem:[%s1 + $0x2ac] sm:$0xff]
  %v144 = vld [vmem:[%s1 + $0x2b4] sm:$0xf]
  %v145 = vld [vmem:[%s1 + $0x2b8] sm:$0xff]
  %v146 = vld [vmem:[%s1 + $0x2c0] sm:$0xf]
  %v147 = vld [vmem:[%s1 + $0x2c4] sm:$0xff]
  %v148 = vld [vmem:[%s1 + $0x2cc] sm:$0xf]
  %v149 = vld [vmem:[%s1 + $0x2d0] sm:$0xff]
  %v150 = vld [vmem:[%s1 + $0x2d8] sm:$0xf]
  %v151 = vld [vmem:[%s1 + $0x2dc] sm:$0xff]
  %v152 = vld [vmem:[%s1 + $0x2e4] sm:$0xf]
  %v153 = vld [vmem:[%s1 + $0x2e8] sm:$0xff]
  %v154 = vld [vmem:[%s1 + $0x2f0] sm:$0xf]
  %v155 = vld [vmem:[%s1 + $0x2f4] sm:$0xff]
  %v156 = vld [vmem:[%s1 + $0x2fc] sm:$0xf]
  %v157 = vld [vmem:[%s1 + $0x300] sm:$0xff]
  %v158 = vld [vmem:[%s1 + $0x308] sm:$0xf]
  %v159 = vld [vmem:[%s1 + $0x30c] sm:$0xff]
  %v160 = vld [vmem:[%s1 + $0x314] sm:$0xf]
  %v161 = vld [vmem:[%s1 + $0x318] sm:$0xff]
  %v162 = vld [vmem:[%s1 + $0x320] sm:$0xf]
  %v163 = vld [vmem:[%s1 + $0x324] sm:$0xff]
  %v164 = vld [vmem:[%s1 + $0x32c] sm:$0xf]
  %v165 = vld [vmem:[%s1 + $0x330] sm:$0xff]
  %v166 = vld [vmem:[%s1 + $0x338] sm:$0xf]
  %v167 = vld [vmem:[%s1 + $0x33c] sm:$0xff]
  %v168 = vld [vmem:[%s1 + $0x344] sm:$0xf]
  %v169 = vld [vmem:[%s1 + $0x348] sm:$0xff]
  %v170 = vld [vmem:[%s1 + $0x350] sm:$0xf]
  %v171 = vld [vmem:[%s1 + $0x354] sm:$0xff]
  %v172 = vld [vmem:[%s1 + $0x35c] sm:$0xf]
  %v173 = vld [vmem:[%s1 + $0x360] sm:$0xff]
  %v174 = vld [vmem:[%s1 + $0x368] sm:$0xf]
  %v175 = vld [vmem:[%s1 + $0x36c] sm:$0xff]
  %v176 = vld [vmem:[%s1 + $0x374] sm:$0xf]
  %v177 = vld [vmem:[%s1 + $0x378] sm:$0xff]
  %v178 = vld [vmem:[%s1 + $0x380] sm:$0xf]
  %v179 = vld [vmem:[%s1 + $0x384] sm:$0xff]
  %v180 = vld [vmem:[%s1 + $0x38c] sm:$0xf]
  %v181 = vld [vmem:[%s1 + $0x390] sm:$0xff]
  %v182 = vld [vmem:[%s1 + $0x398] sm:$0xf]
  %v183 = vld [vmem:[%s1 + $0x39c] sm:$0xff]
  %v184 = vld [vmem:[%s1 + $0x3a4] sm:$0xf]
  %v185 = vld [vmem:[%s1 + $0x3a8] sm:$0xff]
  %v186 = vld [vmem:[%s1 + $0x3b0] sm:$0xf]
  %v187 = vld [vmem:[%s1 + $0x3b4] sm:$0xff]
  %v188 = vld [vmem:[%s1 + $0x3bc] sm:$0xf]
  %v189 = vld [vmem:[%s1 + $0x3c0] sm:$0xff]
  %v190 = vld [vmem:[%s1 + $0x3c8] sm:$0xf]
  %v191 = vld [vmem:[%s1 + $0x3cc] sm:$0xff]
  %v192 = vld [vmem:[%s1 + $0x3d4] sm:$0xf]
  %v193 = vld [vmem:[%s1 + $0x3d8] sm:$0xff]
  %v194 = vld [vmem:[%s1 + $0x3e0] sm:$0xf]
  %v195 = vld [vmem:[%s1 + $0x3e4] sm:$0xff]
  %v196 = vld [vmem:[%s1 + $0x3ec] sm:$0xf]
  %v197 = vld [vmem:[%s1 + $0x3f0] sm:$0xff]
  %v198 = vld [vmem:[%s1 + $0x3f8] sm:$0xf]
  %v199 = vld [vmem:[%s1 + $0x3fc] sm:$0xff]
  %v200 = vld [vmem:[%s1 + $0x404] sm:$0xf]
  %v201 = vld [vmem:[%s1 + $0x408] sm:$0xff]
  %v202 = vld [vmem:[%s1 + $0x410] sm:$0xf]
  %v203 = vld [vmem:[%s1 + $0x414] sm:$0xff]
  %v204 = vld [vmem:[%s1 + $0x41c] sm:$0xf]
  %v205 = vld [vmem:[%s1 + $0x420] sm:$0xff]
  %v206 = vld [vmem:[%s1 + $0x428] sm:$0xf]
  %v207 = vld [vmem:[%s1 + $0x42c] sm:$0xff]
  %v208 = vld [vmem:[%s1 + $0x434] sm:$0xf]
  %v209 = vld [vmem:[%s1 + $0x438] sm:$0xff]
  %v210 = vld [vmem:[%s1 + $0x440] sm:$0xf]
  %v211 = vld [vmem:[%s1 + $0x444] sm:$0xff]
  %v212 = vld [vmem:[%s1 + $0x44c] sm:$0xf]
  %v213 = vld [vmem:[%s1 + $0x450] sm:$0xff]
  %v214 = vld [vmem:[%s1 + $0x458] sm:$0xf]
  %v215 = vld [vmem:[%s1 + $0x45c] sm:$0xff]
  %v216 = vld [vmem:[%s1 + $0x464] sm:$0xf]
  %v217 = vld [vmem:[%s1 + $0x468] sm:$0xff]
  %v218 = vld [vmem:[%s1 + $0x470] sm:$0xf]
  %v219 = vld [vmem:[%s1 + $0x474] sm:$0xff]
  %v220 = vld [vmem:[%s1 + $0x47c] sm:$0xf]
  %v221 = vld [vmem:[%s1 + $0x480] sm:$0xff]
  %v222 = vld [vmem:[%s1 + $0x488] sm:$0xf]
  %v223 = vld [vmem:[%s1 + $0x48c] sm:$0xff]
  %v224 = vld [vmem:[%s1 + $0x494] sm:$0xf]
  %v225 = vld [vmem:[%s1 + $0x498] sm:$0xff]
  %v226 = vld [vmem:[%s1 + $0x4a0] sm:$0xf]
  %v227 = vld [vmem:[%s1 + $0x4a4] sm:$0xff]
  %v228 = vld [vmem:[%s1 + $0x4ac] sm:$0xf]
  %v229 = vld [vmem:[%s1 + $0x4b0] sm:$0xff]
  %v230 = vld [vmem:[%s1 + $0x4b8] sm:$0xf]
  %v231 = vld [vmem:[%s1 + $0x4bc] sm:$0xff]
  %v232 = vld [vmem:[%s1 + $0x4c4] sm:$0xf]
  %v233 = vld [vmem:[%s1 + $0x4c8] sm:$0xff]
  %v234 = vld [vmem:[%s1 + $0x4d0] sm:$0xf]
  %v235 = vld [vmem:[%s1 + $0x4d4] sm:$0xff]
  %v236 = vld [vmem:[%s1 + $0x4dc] sm:$0xf]
  %v237 = vld [vmem:[%s1 + $0x4e0] sm:$0xff]
  %v238 = vld [vmem:[%s1 + $0x4e8] sm:$0xf]
  %v239 = vld [vmem:[%s1 + $0x4ec] sm:$0xff]
  %v240 = vld [vmem:[%s1 + $0x4f4] sm:$0xf]
  %v241 = vld [vmem:[%s1 + $0x4f8] sm:$0xff]
  %v242 = vld [vmem:[%s1 + $0x500] sm:$0xf]
  %v243 = vld [vmem:[%s1 + $0x504] sm:$0xff]
  %v244 = vld [vmem:[%s1 + $0x50c] sm:$0xf]
  %v245 = vld [vmem:[%s1 + $0x510] sm:$0xff]
  %v246 = vld [vmem:[%s1 + $0x518] sm:$0xf]
  %v247 = vld [vmem:[%s1 + $0x51c] sm:$0xff]
  %v248 = vld [vmem:[%s1 + $0x524] sm:$0xf]
  %v249 = vld [vmem:[%s1 + $0x528] sm:$0xff]
  %v250 = vld [vmem:[%s1 + $0x530] sm:$0xf]
  %v251 = vld [vmem:[%s1 + $0x534] sm:$0xff]
  %v252 = vld [vmem:[%s1 + $0x53c] sm:$0xf]
  %v253 = vld [vmem:[%s2] sm:$0x7]
  %v255 = vlaneseq
  %v256 = vshrl.u32 %v255, 7
  %v257 = vsub.s32 0, %v256
  %v258 = vrot.slane %v253, %v257
  %v259 = vlaneseq
  %v260 = vshrl.u32 %v259, 7
  %v261 = vsub.s32 1, %v260
  %v262 = vrot.slane %v253, %v261
  %v263 = vlaneseq
  %v264 = vshrl.u32 %v263, 7
  %v265 = vsub.s32 2, %v264
  %v266 = vrot.slane %v253, %v265
  %v278 = vunpack.c.l.b16 %v21
  %v279 = vunpack.c.h.b16 %v21
  %v280 = vunpack.c.l.b16 %v22
  %v281 = vunpack.c.h.b16 %v22
  %v282 = vunpack.c.l.b16 %v23
  %v283 = vunpack.c.h.b16 %v23
  %v284 = vunpack.c.l.b16 %v24
  %v285 = vunpack.c.l.b16 %v25
  %v286 = vunpack.c.h.b16 %v25
  %v287 = vunpack.c.l.b16 %v26
  %v288 = vunpack.c.h.b16 %v26
  %v289 = vunpack.c.l.b16 %v27
  %v290 = vunpack.c.h.b16 %v27
  %v291 = vunpack.c.l.b16 %v28
  %v292 = vpack.c.b16 %v285, %v278
  %v293 = vpack.c.b16 %v286, %v279
  %v294 = vpack.c.b16 %v287, %v280
  %v295 = vpack.c.b16 %v288, %v281
  %v296 = vpack.c.b16 %v289, %v282
  %v297 = vpack.c.b16 %v290, %v283
  %v298 = vpack.c.b16 %v291, %v284
  %v530 = vunpack.c.l.b16 %v29
  %v531 = vunpack.c.h.b16 %v29
  %v532 = vunpack.c.l.b16 %v30
  %v533 = vunpack.c.l.b16 %v31
  %v534 = vunpack.c.h.b16 %v31
  %v535 = vunpack.c.l.b16 %v32
  %v536 = vunpack.c.l.b16 %v33
  %v537 = vunpack.c.h.b16 %v33
  %v538 = vunpack.c.l.b16 %v34
  %v539 = vunpack.c.l.b16 %v35
  %v540 = vunpack.c.h.b16 %v35
  %v541 = vunpack.c.l.b16 %v36
  %v542 = vunpack.c.l.b16 %v37
  %v543 = vunpack.c.h.b16 %v37
  %v544 = vunpack.c.l.b16 %v38
  %v545 = vunpack.c.l.b16 %v39
  %v546 = vunpack.c.h.b16 %v39
  %v547 = vunpack.c.l.b16 %v40
  %v548 = vunpack.c.l.b16 %v41
  %v549 = vunpack.c.h.b16 %v41
  %v550 = vunpack.c.l.b16 %v42
  %v551 = vunpack.c.l.b16 %v43
  %v552 = vunpack.c.h.b16 %v43
  %v553 = vunpack.c.l.b16 %v44
  %v554 = vunpack.c.l.b16 %v45
  %v555 = vunpack.c.h.b16 %v45
  %v556 = vunpack.c.l.b16 %v46
  %v557 = vunpack.c.l.b16 %v47
  %v558 = vunpack.c.h.b16 %v47
  %v559 = vunpack.c.l.b16 %v48
  %v560 = vunpack.c.l.b16 %v49
  %v561 = vunpack.c.h.b16 %v49
  %v562 = vunpack.c.l.b16 %v50
  %v563 = vunpack.c.l.b16 %v51
  %v564 = vunpack.c.h.b16 %v51
  %v565 = vunpack.c.l.b16 %v52
  %v566 = vunpack.c.l.b16 %v53
  %v567 = vunpack.c.h.b16 %v53
  %v568 = vunpack.c.l.b16 %v54
  %v569 = vunpack.c.l.b16 %v55
  %v570 = vunpack.c.h.b16 %v55
  %v571 = vunpack.c.l.b16 %v56
  %v572 = vunpack.c.l.b16 %v57
  %v573 = vunpack.c.h.b16 %v57
  %v574 = vunpack.c.l.b16 %v58
  %v575 = vunpack.c.l.b16 %v59
  %v576 = vunpack.c.h.b16 %v59
  %v577 = vunpack.c.l.b16 %v60
  %v578 = vunpack.c.l.b16 %v61
  %v579 = vunpack.c.h.b16 %v61
  %v580 = vunpack.c.l.b16 %v62
  %v581 = vunpack.c.l.b16 %v63
  %v582 = vunpack.c.h.b16 %v63
  %v583 = vunpack.c.l.b16 %v64
  %v584 = vunpack.c.l.b16 %v65
  %v585 = vunpack.c.h.b16 %v65
  %v586 = vunpack.c.l.b16 %v66
  %v587 = vunpack.c.l.b16 %v67
  %v588 = vunpack.c.h.b16 %v67
  %v589 = vunpack.c.l.b16 %v68
  %v590 = vunpack.c.l.b16 %v69
  %v591 = vunpack.c.h.b16 %v69
  %v592 = vunpack.c.l.b16 %v70
  %v593 = vunpack.c.l.b16 %v71
  %v594 = vunpack.c.h.b16 %v71
  %v595 = vunpack.c.l.b16 %v72
  %v596 = vunpack.c.l.b16 %v73
  %v597 = vunpack.c.h.b16 %v73
  %v598 = vunpack.c.l.b16 %v74
  %v599 = vunpack.c.l.b16 %v75
  %v600 = vunpack.c.h.b16 %v75
  %v601 = vunpack.c.l.b16 %v76
  %v602 = vunpack.c.l.b16 %v77
  %v603 = vunpack.c.h.b16 %v77
  %v604 = vunpack.c.l.b16 %v78
  %v605 = vunpack.c.l.b16 %v79
  %v606 = vunpack.c.h.b16 %v79
  %v607 = vunpack.c.l.b16 %v80
  %v608 = vunpack.c.l.b16 %v81
  %v609 = vunpack.c.h.b16 %v81
  %v610 = vunpack.c.l.b16 %v82
  %v611 = vunpack.c.l.b16 %v83
  %v612 = vunpack.c.h.b16 %v83
  %v613 = vunpack.c.l.b16 %v84
  %v614 = vunpack.c.l.b16 %v85
  %v615 = vunpack.c.h.b16 %v85
  %v616 = vunpack.c.l.b16 %v86
  %v617 = vunpack.c.l.b16 %v87
  %v618 = vunpack.c.h.b16 %v87
  %v619 = vunpack.c.l.b16 %v88
  %v620 = vunpack.c.l.b16 %v89
  %v621 = vunpack.c.h.b16 %v89
  %v622 = vunpack.c.l.b16 %v90
  %v623 = vunpack.c.l.b16 %v91
  %v624 = vunpack.c.h.b16 %v91
  %v625 = vunpack.c.l.b16 %v92
  %v626 = vunpack.c.l.b16 %v93
  %v627 = vunpack.c.h.b16 %v93
  %v628 = vunpack.c.l.b16 %v94
  %v629 = vunpack.c.l.b16 %v95
  %v630 = vunpack.c.h.b16 %v95
  %v631 = vunpack.c.l.b16 %v96
  %v632 = vunpack.c.l.b16 %v97
  %v633 = vunpack.c.h.b16 %v97
  %v634 = vunpack.c.l.b16 %v98
  %v635 = vunpack.c.l.b16 %v99
  %v636 = vunpack.c.h.b16 %v99
  %v637 = vunpack.c.l.b16 %v100
  %v638 = vunpack.c.l.b16 %v101
  %v639 = vunpack.c.h.b16 %v101
  %v640 = vunpack.c.l.b16 %v102
  %v641 = vunpack.c.l.b16 %v103
  %v642 = vunpack.c.h.b16 %v103
  %v643 = vunpack.c.l.b16 %v104
  %v644 = vunpack.c.l.b16 %v105
  %v645 = vunpack.c.h.b16 %v105
  %v646 = vunpack.c.l.b16 %v106
  %v647 = vunpack.c.l.b16 %v107
  %v648 = vunpack.c.h.b16 %v107
  %v649 = vunpack.c.l.b16 %v108
  %v650 = vunpack.c.l.b16 %v109
  %v651 = vunpack.c.h.b16 %v109
  %v652 = vunpack.c.l.b16 %v110
  %v653 = vunpack.c.l.b16 %v111
  %v654 = vunpack.c.h.b16 %v111
  %v655 = vunpack.c.l.b16 %v112
  %v656 = vunpack.c.l.b16 %v113
  %v657 = vunpack.c.h.b16 %v113
  %v658 = vunpack.c.l.b16 %v114
  %v659 = vunpack.c.l.b16 %v115
  %v660 = vunpack.c.h.b16 %v115
  %v661 = vunpack.c.l.b16 %v116
  %v662 = vunpack.c.l.b16 %v117
  %v663 = vunpack.c.h.b16 %v117
  %v664 = vunpack.c.l.b16 %v118
  %v665 = vunpack.c.l.b16 %v119
  %v666 = vunpack.c.h.b16 %v119
  %v667 = vunpack.c.l.b16 %v120
  %v668 = vunpack.c.l.b16 %v121
  %v669 = vunpack.c.h.b16 %v121
  %v670 = vunpack.c.l.b16 %v122
  %v671 = vunpack.c.l.b16 %v123
  %v672 = vunpack.c.h.b16 %v123
  %v673 = vunpack.c.l.b16 %v124
  %v674 = vunpack.c.l.b16 %v125
  %v675 = vunpack.c.h.b16 %v125
  %v676 = vunpack.c.l.b16 %v126
  %v677 = vunpack.c.l.b16 %v127
  %v678 = vunpack.c.h.b16 %v127
  %v679 = vunpack.c.l.b16 %v128
  %v680 = vunpack.c.l.b16 %v129
  %v681 = vunpack.c.h.b16 %v129
  %v682 = vunpack.c.l.b16 %v130
  %v683 = vunpack.c.l.b16 %v131
  %v684 = vunpack.c.h.b16 %v131
  %v685 = vunpack.c.l.b16 %v132
  %v686 = vunpack.c.l.b16 %v133
  %v687 = vunpack.c.h.b16 %v133
  %v688 = vunpack.c.l.b16 %v134
  %v689 = vunpack.c.l.b16 %v135
  %v690 = vunpack.c.h.b16 %v135
  %v691 = vunpack.c.l.b16 %v136
  %v692 = vunpack.c.l.b16 %v137
  %v693 = vunpack.c.h.b16 %v137
  %v694 = vunpack.c.l.b16 %v138
  %v695 = vunpack.c.l.b16 %v139
  %v696 = vunpack.c.h.b16 %v139
  %v697 = vunpack.c.l.b16 %v140
  %v698 = vunpack.c.l.b16 %v141
  %v699 = vunpack.c.h.b16 %v141
  %v700 = vunpack.c.l.b16 %v142
  %v701 = vunpack.c.l.b16 %v143
  %v702 = vunpack.c.h.b16 %v143
  %v703 = vunpack.c.l.b16 %v144
  %v704 = vunpack.c.l.b16 %v145
  %v705 = vunpack.c.h.b16 %v145
  %v706 = vunpack.c.l.b16 %v146
  %v707 = vunpack.c.l.b16 %v147
  %v708 = vunpack.c.h.b16 %v147
  %v709 = vunpack.c.l.b16 %v148
  %v710 = vunpack.c.l.b16 %v149
  %v711 = vunpack.c.h.b16 %v149
  %v712 = vunpack.c.l.b16 %v150
  %v713 = vunpack.c.l.b16 %v151
  %v714 = vunpack.c.h.b16 %v151
  %v715 = vunpack.c.l.b16 %v152
  %v716 = vunpack.c.l.b16 %v153
  %v717 = vunpack.c.h.b16 %v153
  %v718 = vunpack.c.l.b16 %v154
  %v719 = vunpack.c.l.b16 %v155
  %v720 = vunpack.c.h.b16 %v155
  %v721 = vunpack.c.l.b16 %v156
  %v722 = vunpack.c.l.b16 %v157
  %v723 = vunpack.c.h.b16 %v157
  %v724 = vunpack.c.l.b16 %v158
  %v725 = vunpack.c.l.b16 %v159
  %v726 = vunpack.c.h.b16 %v159
  %v727 = vunpack.c.l.b16 %v160
  %v728 = vunpack.c.l.b16 %v161
  %v729 = vunpack.c.h.b16 %v161
  %v730 = vunpack.c.l.b16 %v162
  %v731 = vunpack.c.l.b16 %v163
  %v732 = vunpack.c.h.b16 %v163
  %v733 = vunpack.c.l.b16 %v164
  %v734 = vunpack.c.l.b16 %v165
  %v735 = vunpack.c.h.b16 %v165
  %v736 = vunpack.c.l.b16 %v166
  %v737 = vunpack.c.l.b16 %v167
  %v738 = vunpack.c.h.b16 %v167
  %v739 = vunpack.c.l.b16 %v168
  %v740 = vunpack.c.l.b16 %v169
  %v741 = vunpack.c.h.b16 %v169
  %v742 = vunpack.c.l.b16 %v170
  %v743 = vunpack.c.l.b16 %v171
  %v744 = vunpack.c.h.b16 %v171
  %v745 = vunpack.c.l.b16 %v172
  %v746 = vunpack.c.l.b16 %v173
  %v747 = vunpack.c.h.b16 %v173
  %v748 = vunpack.c.l.b16 %v174
  %v749 = vunpack.c.l.b16 %v175
  %v750 = vunpack.c.h.b16 %v175
  %v751 = vunpack.c.l.b16 %v176
  %v752 = vunpack.c.l.b16 %v177
  %v753 = vunpack.c.h.b16 %v177
  %v754 = vunpack.c.l.b16 %v178
  %v755 = vunpack.c.l.b16 %v179
  %v756 = vunpack.c.h.b16 %v179
  %v757 = vunpack.c.l.b16 %v180
  %v758 = vunpack.c.l.b16 %v181
  %v759 = vunpack.c.h.b16 %v181
  %v760 = vunpack.c.l.b16 %v182
  %v761 = vunpack.c.l.b16 %v183
  %v762 = vunpack.c.h.b16 %v183
  %v763 = vunpack.c.l.b16 %v184
  %v764 = vunpack.c.l.b16 %v185
  %v765 = vunpack.c.h.b16 %v185
  %v766 = vunpack.c.l.b16 %v186
  %v767 = vunpack.c.l.b16 %v187
  %v768 = vunpack.c.h.b16 %v187
  %v769 = vunpack.c.l.b16 %v188
  %v770 = vunpack.c.l.b16 %v189
  %v771 = vunpack.c.h.b16 %v189
  %v772 = vunpack.c.l.b16 %v190
  %v773 = vunpack.c.l.b16 %v191
  %v774 = vunpack.c.h.b16 %v191
  %v775 = vunpack.c.l.b16 %v192
  %v776 = vunpack.c.l.b16 %v193
  %v777 = vunpack.c.h.b16 %v193
  %v778 = vunpack.c.l.b16 %v194
  %v779 = vunpack.c.l.b16 %v195
  %v780 = vunpack.c.h.b16 %v195
  %v781 = vunpack.c.l.b16 %v196
  %v782 = vunpack.c.l.b16 %v197
  %v783 = vunpack.c.h.b16 %v197
  %v784 = vunpack.c.l.b16 %v198
  %v785 = vunpack.c.l.b16 %v199
  %v786 = vunpack.c.h.b16 %v199
  %v787 = vunpack.c.l.b16 %v200
  %v788 = vunpack.c.l.b16 %v201
  %v789 = vunpack.c.h.b16 %v201
  %v790 = vunpack.c.l.b16 %v202
  %v791 = vunpack.c.l.b16 %v203
  %v792 = vunpack.c.h.b16 %v203
  %v793 = vunpack.c.l.b16 %v204
  %v794 = vunpack.c.l.b16 %v205
  %v795 = vunpack.c.h.b16 %v205
  %v796 = vunpack.c.l.b16 %v206
  %v797 = vunpack.c.l.b16 %v207
  %v798 = vunpack.c.h.b16 %v207
  %v799 = vunpack.c.l.b16 %v208
  %v800 = vunpack.c.l.b16 %v209
  %v801 = vunpack.c.h.b16 %v209
  %v802 = vunpack.c.l.b16 %v210
  %v803 = vunpack.c.l.b16 %v211
  %v804 = vunpack.c.h.b16 %v211
  %v805 = vunpack.c.l.b16 %v212
  %v806 = vunpack.c.l.b16 %v213
  %v807 = vunpack.c.h.b16 %v213
  %v808 = vunpack.c.l.b16 %v214
  %v809 = vunpack.c.l.b16 %v215
  %v810 = vunpack.c.h.b16 %v215
  %v811 = vunpack.c.l.b16 %v216
  %v812 = vunpack.c.l.b16 %v217
  %v813 = vunpack.c.h.b16 %v217
  %v814 = vunpack.c.l.b16 %v218
  %v815 = vunpack.c.l.b16 %v219
  %v816 = vunpack.c.h.b16 %v219
  %v817 = vunpack.c.l.b16 %v220
  %v818 = vunpack.c.l.b16 %v221
  %v819 = vunpack.c.h.b16 %v221
  %v820 = vunpack.c.l.b16 %v222
  %v821 = vunpack.c.l.b16 %v223
  %v822 = vunpack.c.h.b16 %v223
  %v823 = vunpack.c.l.b16 %v224
  %v824 = vunpack.c.l.b16 %v225
  %v825 = vunpack.c.h.b16 %v225
  %v826 = vunpack.c.l.b16 %v226
  %v827 = vunpack.c.l.b16 %v227
  %v828 = vunpack.c.h.b16 %v227
  %v829 = vunpack.c.l.b16 %v228
  %v830 = vunpack.c.l.b16 %v229
  %v831 = vunpack.c.h.b16 %v229
  %v832 = vunpack.c.l.b16 %v230
  %v833 = vunpack.c.l.b16 %v231
  %v834 = vunpack.c.h.b16 %v231
  %v835 = vunpack.c.l.b16 %v232
  %v836 = vunpack.c.l.b16 %v233
  %v837 = vunpack.c.h.b16 %v233
  %v838 = vunpack.c.l.b16 %v234
  %v839 = vunpack.c.l.b16 %v235
  %v840 = vunpack.c.h.b16 %v235
  %v841 = vunpack.c.l.b16 %v236
  %v842 = vunpack.c.l.b16 %v237
  %v843 = vunpack.c.h.b16 %v237
  %v844 = vunpack.c.l.b16 %v238
  %v845 = vunpack.c.l.b16 %v239
  %v846 = vunpack.c.h.b16 %v239
  %v847 = vunpack.c.l.b16 %v240
  %v848 = vunpack.c.l.b16 %v241
  %v849 = vunpack.c.h.b16 %v241
  %v850 = vunpack.c.l.b16 %v242
  %v851 = vunpack.c.l.b16 %v243
  %v852 = vunpack.c.h.b16 %v243
  %v853 = vunpack.c.l.b16 %v244
  %v854 = vunpack.c.l.b16 %v245
  %v855 = vunpack.c.h.b16 %v245
  %v856 = vunpack.c.l.b16 %v246
  %v857 = vunpack.c.l.b16 %v247
  %v858 = vunpack.c.h.b16 %v247
  %v859 = vunpack.c.l.b16 %v248
  %v860 = vunpack.c.l.b16 %v249
  %v861 = vunpack.c.h.b16 %v249
  %v862 = vunpack.c.l.b16 %v250
  %v863 = vunpack.c.l.b16 %v251
  %v864 = vunpack.c.h.b16 %v251
  %v865 = vunpack.c.l.b16 %v252
  %v866 = vpack.c.b16 %v533, %v530
  %v867 = vpack.c.b16 %v534, %v531
  %v868 = vpack.c.b16 %v535, %v532
  %v869 = vpack.c.b16 %v539, %v536
  %v870 = vpack.c.b16 %v540, %v537
  %v871 = vpack.c.b16 %v541, %v538
  %v872 = vpack.c.b16 %v545, %v542
  %v873 = vpack.c.b16 %v546, %v543
  %v874 = vpack.c.b16 %v547, %v544
  %v875 = vpack.c.b16 %v551, %v548
  %v876 = vpack.c.b16 %v552, %v549
  %v877 = vpack.c.b16 %v553, %v550
  %v878 = vpack.c.b16 %v557, %v554
  %v879 = vpack.c.b16 %v558, %v555
  %v880 = vpack.c.b16 %v559, %v556
  %v881 = vpack.c.b16 %v563, %v560
  %v882 = vpack.c.b16 %v564, %v561
  %v883 = vpack.c.b16 %v565, %v562
  %v884 = vpack.c.b16 %v569, %v566
  %v885 = vpack.c.b16 %v570, %v567
  %v886 = vpack.c.b16 %v571, %v568
  %v887 = vpack.c.b16 %v575, %v572
  %v888 = vpack.c.b16 %v576, %v573
  %v889 = vpack.c.b16 %v577, %v574
  %v890 = vpack.c.b16 %v581, %v578
  %v891 = vpack.c.b16 %v582, %v579
  %v892 = vpack.c.b16 %v583, %v580
  %v893 = vpack.c.b16 %v587, %v584
  %v894 = vpack.c.b16 %v588, %v585
  %v895 = vpack.c.b16 %v589, %v586
  %v896 = vpack.c.b16 %v593, %v590
  %v897 = vpack.c.b16 %v594, %v591
  %v898 = vpack.c.b16 %v595, %v592
  %v899 = vpack.c.b16 %v599, %v596
  %v900 = vpack.c.b16 %v600, %v597
  %v901 = vpack.c.b16 %v601, %v598
  %v902 = vpack.c.b16 %v605, %v602
  %v903 = vpack.c.b16 %v606, %v603
  %v904 = vpack.c.b16 %v607, %v604
  %v905 = vpack.c.b16 %v611, %v608
  %v906 = vpack.c.b16 %v612, %v609
  %v907 = vpack.c.b16 %v613, %v610
  %v908 = vpack.c.b16 %v617, %v614
  %v909 = vpack.c.b16 %v618, %v615
  %v910 = vpack.c.b16 %v619, %v616
  %v911 = vpack.c.b16 %v623, %v620
  %v912 = vpack.c.b16 %v624, %v621
  %v913 = vpack.c.b16 %v625, %v622
  %v914 = vpack.c.b16 %v629, %v626
  %v915 = vpack.c.b16 %v630, %v627
  %v916 = vpack.c.b16 %v631, %v628
  %v917 = vpack.c.b16 %v635, %v632
  %v918 = vpack.c.b16 %v636, %v633
  %v919 = vpack.c.b16 %v637, %v634
  %v920 = vpack.c.b16 %v641, %v638
  %v921 = vpack.c.b16 %v642, %v639
  %v922 = vpack.c.b16 %v643, %v640
  %v923 = vpack.c.b16 %v647, %v644
  %v924 = vpack.c.b16 %v648, %v645
  %v925 = vpack.c.b16 %v649, %v646
  %v926 = vpack.c.b16 %v653, %v650
  %v927 = vpack.c.b16 %v654, %v651
  %v928 = vpack.c.b16 %v655, %v652
  %v929 = vpack.c.b16 %v659, %v656
  %v930 = vpack.c.b16 %v660, %v657
  %v931 = vpack.c.b16 %v661, %v658
  %v932 = vpack.c.b16 %v665, %v662
  %v933 = vpack.c.b16 %v666, %v663
  %v934 = vpack.c.b16 %v667, %v664
  %v935 = vpack.c.b16 %v671, %v668
  %v936 = vpack.c.b16 %v672, %v669
  %v937 = vpack.c.b16 %v673, %v670
  %v938 = vpack.c.b16 %v677, %v674
  %v939 = vpack.c.b16 %v678, %v675
  %v940 = vpack.c.b16 %v679, %v676
  %v941 = vpack.c.b16 %v683, %v680
  %v942 = vpack.c.b16 %v684, %v681
  %v943 = vpack.c.b16 %v685, %v682
  %v944 = vpack.c.b16 %v689, %v686
  %v945 = vpack.c.b16 %v690, %v687
  %v946 = vpack.c.b16 %v691, %v688
  %v947 = vpack.c.b16 %v695, %v692
  %v948 = vpack.c.b16 %v696, %v693
  %v949 = vpack.c.b16 %v697, %v694
  %v950 = vpack.c.b16 %v701, %v698
  %v951 = vpack.c.b16 %v702, %v699
  %v952 = vpack.c.b16 %v703, %v700
  %v953 = vpack.c.b16 %v707, %v704
  %v954 = vpack.c.b16 %v708, %v705
  %v955 = vpack.c.b16 %v709, %v706
  %v956 = vpack.c.b16 %v713, %v710
  %v957 = vpack.c.b16 %v714, %v711
  %v958 = vpack.c.b16 %v715, %v712
  %v959 = vpack.c.b16 %v719, %v716
  %v960 = vpack.c.b16 %v720, %v717
  %v961 = vpack.c.b16 %v721, %v718
  %v962 = vpack.c.b16 %v725, %v722
  %v963 = vpack.c.b16 %v726, %v723
  %v964 = vpack.c.b16 %v727, %v724
  %v965 = vpack.c.b16 %v731, %v728
  %v966 = vpack.c.b16 %v732, %v729
  %v967 = vpack.c.b16 %v733, %v730
  %v968 = vpack.c.b16 %v737, %v734
  %v969 = vpack.c.b16 %v738, %v735
  %v970 = vpack.c.b16 %v739, %v736
  %v971 = vpack.c.b16 %v743, %v740
  %v972 = vpack.c.b16 %v744, %v741
  %v973 = vpack.c.b16 %v745, %v742
  %v974 = vpack.c.b16 %v749, %v746
  %v975 = vpack.c.b16 %v750, %v747
  %v976 = vpack.c.b16 %v751, %v748
  %v977 = vpack.c.b16 %v755, %v752
  %v978 = vpack.c.b16 %v756, %v753
  %v979 = vpack.c.b16 %v757, %v754
  %v980 = vpack.c.b16 %v761, %v758
  %v981 = vpack.c.b16 %v762, %v759
  %v982 = vpack.c.b16 %v763, %v760
  %v983 = vpack.c.b16 %v767, %v764
  %v984 = vpack.c.b16 %v768, %v765
  %v985 = vpack.c.b16 %v769, %v766
  %v986 = vpack.c.b16 %v773, %v770
  %v987 = vpack.c.b16 %v774, %v771
  %v988 = vpack.c.b16 %v775, %v772
  %v989 = vpack.c.b16 %v779, %v776
  %v990 = vpack.c.b16 %v780, %v777
  %v991 = vpack.c.b16 %v781, %v778
  %v992 = vpack.c.b16 %v785, %v782
  %v993 = vpack.c.b16 %v786, %v783
  %v994 = vpack.c.b16 %v787, %v784
  %v995 = vpack.c.b16 %v791, %v788
  %v996 = vpack.c.b16 %v792, %v789
  %v997 = vpack.c.b16 %v793, %v790
  %v998 = vpack.c.b16 %v797, %v794
  %v999 = vpack.c.b16 %v798, %v795
  %v1000 = vpack.c.b16 %v799, %v796
  %v1001 = vpack.c.b16 %v803, %v800
  %v1002 = vpack.c.b16 %v804, %v801
  %v1003 = vpack.c.b16 %v805, %v802
  %v1004 = vpack.c.b16 %v809, %v806
  %v1005 = vpack.c.b16 %v810, %v807
  %v1006 = vpack.c.b16 %v811, %v808
  %v1007 = vpack.c.b16 %v815, %v812
  %v1008 = vpack.c.b16 %v816, %v813
  %v1009 = vpack.c.b16 %v817, %v814
  %v1010 = vpack.c.b16 %v821, %v818
  %v1011 = vpack.c.b16 %v822, %v819
  %v1012 = vpack.c.b16 %v823, %v820
  %v1013 = vpack.c.b16 %v827, %v824
  %v1014 = vpack.c.b16 %v828, %v825
  %v1015 = vpack.c.b16 %v829, %v826
  %v1016 = vpack.c.b16 %v833, %v830
  %v1017 = vpack.c.b16 %v834, %v831
  %v1018 = vpack.c.b16 %v835, %v832
  %v1019 = vpack.c.b16 %v839, %v836
  %v1020 = vpack.c.b16 %v840, %v837
  %v1021 = vpack.c.b16 %v841, %v838
  %v1022 = vpack.c.b16 %v845, %v842
  %v1023 = vpack.c.b16 %v846, %v843
  %v1024 = vpack.c.b16 %v847, %v844
  %v1025 = vpack.c.b16 %v851, %v848
  %v1026 = vpack.c.b16 %v852, %v849
  %v1027 = vpack.c.b16 %v853, %v850
  %v1028 = vpack.c.b16 %v857, %v854
  %v1029 = vpack.c.b16 %v858, %v855
  %v1030 = vpack.c.b16 %v859, %v856
  %v1031 = vpack.c.b16 %v863, %v860
  %v1032 = vpack.c.b16 %v864, %v861
  %v1033 = vpack.c.b16 %v865, %v862
  %1202 = vmatprep.subr.bf16.mxu0 %v867
  %1203 = vmatpush1.bf16.msra.mxu0 %v866
  %1204 = vmatprep.subr.bf16.mxu0 %v870
  %1205 = vmatpush1.bf16.msra.mxu0 %v869
  %1206 = vmatprep.subr.bf16.mxu0 %v873
  %1207 = vmatpush1.bf16.msra.mxu0 %v872
  %1208 = vmatprep.subr.bf16.mxu0 %v876
  %1209 = vmatpush1.bf16.msra.mxu0 %v875
  %1210 = vmatprep.subr.bf16.mxu0 %v879
  %1211 = vmatpush1.bf16.msra.mxu0 %v878
  %1212 = vmatprep.subr.bf16.mxu0 %v882
  %1213 = vmatpush1.bf16.msra.mxu0 %v881
  %1214 = vmatprep.subr.bf16.mxu0 %v885
  %1215 = vmatpush1.bf16.msra.mxu0 %v884
  %1216 = vmatprep.subr.bf16.mxu0 %v888
  %1217 = vmatpush1.bf16.msra.mxu0 %v887
  %1218 = vmatprep.subr.bf16.mxu0 %v891
  %1219 = vmatpush1.bf16.msra.mxu0 %v890
  %1220 = vmatprep.subr.bf16.mxu0 %v894
  %1221 = vmatpush1.bf16.msra.mxu0 %v893
  %1222 = vmatprep.subr.bf16.mxu0 %v897
  %1223 = vmatpush1.bf16.msra.mxu0 %v896
  %1224 = vmatprep.subr.bf16.mxu0 %v900
  %1225 = vmatpush1.bf16.msra.mxu0 %v899
  %1226 = vmatprep.subr.bf16.mxu0 %v903
  %1227 = vmatpush1.bf16.msra.mxu0 %v902
  %1228 = vmatprep.subr.bf16.mxu0 %v906
  %1229 = vmatpush1.bf16.msra.mxu0 %v905
  %1230 = vmatprep.subr.bf16.mxu0 %v909
  %1231 = vmatpush1.bf16.msra.mxu0 %v908
  %1232 = vmatprep.subr.bf16.mxu0 %v912
  %1233 = vmatpush1.bf16.msra.mxu0 %v911
  %1234 = vmatprep.mubr.bf16.mxu0 %v293
  %1235 = vmatmul.mubr.bf16.gmra.mrb[0].mxu0 %v292
  %v1236 = vpop.f32.mrb[0].mxu0
  %v1237 = vadd.f32 %v258, %v1236
  %v1238 = vpop.f32.mrb[0].mxu0
  %v1239 = vadd.f32 %v262, %v1238
  %v1240 = vpop.f32.mrb[0].mxu0
  %v1241 = vadd.f32 %v258, %v1240
  %v1242 = vpop.f32.mrb[0].mxu0
  %v1243 = vadd.f32 %v262, %v1242
  %1244 = vdwg.mxu0
  %1245 = vmatprep.subr.bf16.mxu0 %v915
  %1246 = vmatpush1.bf16.msra.mxu0 %v914
  %1247 = vmatprep.subr.bf16.mxu0 %v918
  %1248 = vmatpush1.bf16.msra.mxu0 %v917
  %1249 = vmatprep.subr.bf16.mxu0 %v921
  %1250 = vmatpush1.bf16.msra.mxu0 %v920
  %1251 = vmatprep.subr.bf16.mxu0 %v924
  %1252 = vmatpush1.bf16.msra.mxu0 %v923
  %1253 = vmatprep.subr.bf16.mxu0 %v927
  %1254 = vmatpush1.bf16.msra.mxu0 %v926
  %1255 = vmatprep.subr.bf16.mxu0 %v930
  %1256 = vmatpush1.bf16.msra.mxu0 %v929
  %1257 = vmatprep.subr.bf16.mxu0 %v933
  %1258 = vmatpush1.bf16.msra.mxu0 %v932
  %1259 = vmatprep.subr.bf16.mxu0 %v936
  %1260 = vmatpush1.bf16.msra.mxu0 %v935
  %1261 = vmatprep.subr.bf16.mxu0 %v939
  %1262 = vmatpush1.bf16.msra.mxu0 %v938
  %1263 = vmatprep.subr.bf16.mxu0 %v942
  %1264 = vmatpush1.bf16.msra.mxu0 %v941
  %1265 = vmatprep.subr.bf16.mxu0 %v945
  %1266 = vmatpush1.bf16.msra.mxu0 %v944
  %1267 = vmatprep.subr.bf16.mxu0 %v948
  %1268 = vmatpush1.bf16.msra.mxu0 %v947
  %1269 = vmatprep.subr.bf16.mxu0 %v951
  %1270 = vmatpush1.bf16.msra.mxu0 %v950
  %1271 = vmatprep.subr.bf16.mxu0 %v954
  %1272 = vmatpush1.bf16.msra.mxu0 %v953
  %1273 = vmatprep.subr.bf16.mxu0 %v957
  %1274 = vmatpush1.bf16.msra.mxu0 %v956
  %1275 = vmatprep.subr.bf16.mxu0 %v960
  %1276 = vmatpush1.bf16.msra.mxu0 %v959
  %1277 = vmatprep.mubr.bf16.mxu0 %v295
  %1278 = vmatmul.mubr.bf16.gmra.mrb[0].mxu0 %v294
  %v1279 = vpop.f32.mrb[0].mxu0
  %v1280 = vadd.f32 %v1237, %v1279
  %v1281 = vpop.f32.mrb[0].mxu0
  %v1282 = vadd.f32 %v1239, %v1281
  %v1283 = vpop.f32.mrb[0].mxu0
  %v1284 = vadd.f32 %v1241, %v1283
  %v1285 = vpop.f32.mrb[0].mxu0
  %v1286 = vadd.f32 %v1243, %v1285
  %1287 = vdwg.mxu0
  %1288 = vmatprep.subr.bf16.mxu0 %v963
  %1289 = vmatpush1.bf16.msra.mxu0 %v962
  %1290 = vmatprep.subr.bf16.mxu0 %v966
  %1291 = vmatpush1.bf16.msra.mxu0 %v965
  %1292 = vmatprep.subr.bf16.mxu0 %v969
  %1293 = vmatpush1.bf16.msra.mxu0 %v968
  %1294 = vmatprep.subr.bf16.mxu0 %v972
  %1295 = vmatpush1.bf16.msra.mxu0 %v971
  %1296 = vmatprep.subr.bf16.mxu0 %v975
  %1297 = vmatpush1.bf16.msra.mxu0 %v974
  %1298 = vmatprep.subr.bf16.mxu0 %v978
  %1299 = vmatpush1.bf16.msra.mxu0 %v977
  %1300 = vmatprep.subr.bf16.mxu0 %v981
  %1301 = vmatpush1.bf16.msra.mxu0 %v980
  %1302 = vmatprep.subr.bf16.mxu0 %v984
  %1303 = vmatpush1.bf16.msra.mxu0 %v983
  %1304 = vmatprep.subr.bf16.mxu0 %v987
  %1305 = vmatpush1.bf16.msra.mxu0 %v986
  %1306 = vmatprep.subr.bf16.mxu0 %v990
  %1307 = vmatpush1.bf16.msra.mxu0 %v989
  %1308 = vmatprep.subr.bf16.mxu0 %v993
  %1309 = vmatpush1.bf16.msra.mxu0 %v992
  %1310 = vmatprep.subr.bf16.mxu0 %v996
  %1311 = vmatpush1.bf16.msra.mxu0 %v995
  %1312 = vmatprep.subr.bf16.mxu0 %v999
  %1313 = vmatpush1.bf16.msra.mxu0 %v998
  %1314 = vmatprep.subr.bf16.mxu0 %v1002
  %1315 = vmatpush1.bf16.msra.mxu0 %v1001
  %1316 = vmatprep.subr.bf16.mxu0 %v1005
  %1317 = vmatpush1.bf16.msra.mxu0 %v1004
  %1318 = vmatprep.subr.bf16.mxu0 %v1008
  %1319 = vmatpush1.bf16.msra.mxu0 %v1007
  %1320 = vmatprep.mubr.bf16.mxu0 %v297
  %1321 = vmatmul.mubr.bf16.gmra.mrb[0].mxu0 %v296
  %v1322 = vpop.f32.mrb[0].mxu0
  %v1323 = vadd.f32 %v1280, %v1322
  %v1324 = vpop.f32.mrb[0].mxu0
  %v1325 = vadd.f32 %v1282, %v1324
  %v1326 = vpop.f32.mrb[0].mxu0
  %v1327 = vadd.f32 %v1284, %v1326
  %v1328 = vpop.f32.mrb[0].mxu0
  %v1329 = vadd.f32 %v1286, %v1328
  %1330 = vdwg.mxu0
  %1331 = vmatprep.subr.bf16.mxu0 %v1011
  %1332 = vmatpush1.bf16.msra.mxu0 %v1010
  %1333 = vmatprep.subr.bf16.mxu0 %v1014
  %1334 = vmatpush1.bf16.msra.mxu0 %v1013
  %1335 = vmatprep.subr.bf16.mxu0 %v1017
  %1336 = vmatpush1.bf16.msra.mxu0 %v1016
  %1337 = vmatprep.subr.bf16.mxu0 %v1020
  %1338 = vmatpush1.bf16.msra.mxu0 %v1019
  %1339 = vmatprep.subr.bf16.mxu0 %v1023
  %1340 = vmatpush1.bf16.msra.mxu0 %v1022
  %1341 = vmatprep.subr.bf16.mxu0 %v1026
  %1342 = vmatpush1.bf16.msra.mxu0 %v1025
  %1343 = vmatprep.subr.bf16.mxu0 %v1029
  %1344 = vmatpush1.bf16.msra.mxu0 %v1028
  %1345 = vmatprep.subr.bf16.mxu0 %v1032
  %1346 = vmatpush1.bf16.msra.mxu0 %v1031
  %1347 = vmatprep.subr.bf16.mxu0 0
  %1348 = vmatpush1.bf16.msra.mxu0 0
  %1349 = vmatprep.subr.bf16.mxu0 0
  %1350 = vmatpush1.bf16.msra.mxu0 0
  %1351 = vmatprep.subr.bf16.mxu0 0
  %1352 = vmatpush1.bf16.msra.mxu0 0
  %1353 = vmatprep.subr.bf16.mxu0 0
  %1354 = vmatpush1.bf16.msra.mxu0 0
  %1355 = vmatprep.subr.bf16.mxu0 0
  %1356 = vmatpush1.bf16.msra.mxu0 0
  %1357 = vmatprep.subr.bf16.mxu0 0
  %1358 = vmatpush1.bf16.msra.mxu0 0
  %1359 = vmatprep.subr.bf16.mxu0 0
  %1360 = vmatpush1.bf16.msra.mxu0 0
  %1361 = vmatprep.subr.bf16.mxu0 0
  %1362 = vmatpush1.bf16.msra.mxu0 0
  %1363 = vmatprep.mubr.bf16.mxu0 0
  %1364 = vmatmul.mubr.bf16.gmra.mrb[0].mxu0 %v298
  %v1365 = vpop.f32.mrb[0].mxu0
  %v1366 = vadd.f32 %v1323, %v1365
  %v1367 = vpop.f32.mrb[0].mxu0
  %v1368 = vadd.f32 %v1325, %v1367
  %v1369 = vpop.f32.mrb[0].mxu0
  %v1370 = vadd.f32 %v1327, %v1369
  %v1371 = vpop.f32.mrb[0].mxu0
  %v1372 = vadd.f32 %v1329, %v1371
  %1373 = vdwg.mxu0
  %1374 = vmatprep.subr.bf16.mxu0 0
  %1375 = vmatpush1.bf16.msra.mxu0 %v868
  %1376 = vmatprep.subr.bf16.mxu0 0
  %1377 = vmatpush1.bf16.msra.mxu0 %v871
  %1378 = vmatprep.subr.bf16.mxu0 0
  %1379 = vmatpush1.bf16.msra.mxu0 %v874
  %1380 = vmatprep.subr.bf16.mxu0 0
  %1381 = vmatpush1.bf16.msra.mxu0 %v877
  %1382 = vmatprep.subr.bf16.mxu0 0
  %1383 = vmatpush1.bf16.msra.mxu0 %v880
  %1384 = vmatprep.subr.bf16.mxu0 0
  %1385 = vmatpush1.bf16.msra.mxu0 %v883
  %1386 = vmatprep.subr.bf16.mxu0 0
  %1387 = vmatpush1.bf16.msra.mxu0 %v886
  %1388 = vmatprep.subr.bf16.mxu0 0
  %1389 = vmatpush1.bf16.msra.mxu0 %v889
  %1390 = vmatprep.subr.bf16.mxu0 0
  %1391 = vmatpush1.bf16.msra.mxu0 %v892
  %1392 = vmatprep.subr.bf16.mxu0 0
  %1393 = vmatpush1.bf16.msra.mxu0 %v895
  %1394 = vmatprep.subr.bf16.mxu0 0
  %1395 = vmatpush1.bf16.msra.mxu0 %v898
  %1396 = vmatprep.subr.bf16.mxu0 0
  %1397 = vmatpush1.bf16.msra.mxu0 %v901
  %1398 = vmatprep.subr.bf16.mxu0 0
  %1399 = vmatpush1.bf16.msra.mxu0 %v904
  %1400 = vmatprep.subr.bf16.mxu0 0
  %1401 = vmatpush1.bf16.msra.mxu0 %v907
  %1402 = vmatprep.subr.bf16.mxu0 0
  %1403 = vmatpush1.bf16.msra.mxu0 %v910
  %1404 = vmatprep.subr.bf16.mxu0 0
  %1405 = vmatpush1.bf16.msra.mxu0 %v913
  %1406 = vmatprep.mubr.bf16.mxu0 %v293
  %1407 = vmatmul.mubr.bf16.gmra.mrb[0].mxu0 %v292
  %v1408 = vpop.f32.mrb[0].mxu0
  %v1409 = vadd.f32 %v266, %v1408
  %v1410 = vpop.f32.mrb[0].mxu0
  %v1411 = vpop.f32.mrb[0].mxu0
  %v1412 = vadd.f32 %v266, %v1411
  %v1413 = vpop.f32.mrb[0].mxu0
  %1414 = vdwg.mxu0
  %1415 = vmatprep.subr.bf16.mxu0 0
  %1416 = vmatpush1.bf16.msra.mxu0 %v916
  %1417 = vmatprep.subr.bf16.mxu0 0
  %1418 = vmatpush1.bf16.msra.mxu0 %v919
  %1419 = vmatprep.subr.bf16.mxu0 0
  %1420 = vmatpush1.bf16.msra.mxu0 %v922
  %1421 = vmatprep.subr.bf16.mxu0 0
  %1422 = vmatpush1.bf16.msra.mxu0 %v925
  %1423 = vmatprep.subr.bf16.mxu0 0
  %1424 = vmatpush1.bf16.msra.mxu0 %v928
  %1425 = vmatprep.subr.bf16.mxu0 0
  %1426 = vmatpush1.bf16.msra.mxu0 %v931
  %1427 = vmatprep.subr.bf16.mxu0 0
  %1428 = vmatpush1.bf16.msra.mxu0 %v934
  %1429 = vmatprep.subr.bf16.mxu0 0
  %1430 = vmatpush1.bf16.msra.mxu0 %v937
  %1431 = vmatprep.subr.bf16.mxu0 0
  %1432 = vmatpush1.bf16.msra.mxu0 %v940
  %1433 = vmatprep.subr.bf16.mxu0 0
  %1434 = vmatpush1.bf16.msra.mxu0 %v943
  %1435 = vmatprep.subr.bf16.mxu0 0
  %1436 = vmatpush1.bf16.msra.mxu0 %v946
  %1437 = vmatprep.subr.bf16.mxu0 0
  %1438 = vmatpush1.bf16.msra.mxu0 %v949
  %1439 = vmatprep.subr.bf16.mxu0 0
  %1440 = vmatpush1.bf16.msra.mxu0 %v952
  %1441 = vmatprep.subr.bf16.mxu0 0
  %1442 = vmatpush1.bf16.msra.mxu0 %v955
  %1443 = vmatprep.subr.bf16.mxu0 0
  %1444 = vmatpush1.bf16.msra.mxu0 %v958
  %1445 = vmatprep.subr.bf16.mxu0 0
  %1446 = vmatpush1.bf16.msra.mxu0 %v961
  %1447 = vmatprep.mubr.bf16.mxu0 %v295
  %1448 = vmatmul.mubr.bf16.gmra.mrb[0].mxu0 %v294
  %v1449 = vpop.f32.mrb[0].mxu0
  %v1450 = vadd.f32 %v1409, %v1449
  %v1451 = vpop.f32.mrb[0].mxu0
  %v1452 = vpop.f32.mrb[0].mxu0
  %v1453 = vadd.f32 %v1412, %v1452
  %v1454 = vpop.f32.mrb[0].mxu0
  %1455 = vdwg.mxu0
  %1456 = vmatprep.subr.bf16.mxu0 0
  %1457 = vmatpush1.bf16.msra.mxu0 %v964
  %1458 = vmatprep.subr.bf16.mxu0 0
  %1459 = vmatpush1.bf16.msra.mxu0 %v967
  %1460 = vmatprep.subr.bf16.mxu0 0
  %1461 = vmatpush1.bf16.msra.mxu0 %v970
  %1462 = vmatprep.subr.bf16.mxu0 0
  %1463 = vmatpush1.bf16.msra.mxu0 %v973
  %1464 = vmatprep.subr.bf16.mxu0 0
  %1465 = vmatpush1.bf16.msra.mxu0 %v976
  %1466 = vmatprep.subr.bf16.mxu0 0
  %1467 = vmatpush1.bf16.msra.mxu0 %v979
  %1468 = vmatprep.subr.bf16.mxu0 0
  %1469 = vmatpush1.bf16.msra.mxu0 %v982
  %1470 = vmatprep.subr.bf16.mxu0 0
  %1471 = vmatpush1.bf16.msra.mxu0 %v985
  %1472 = vmatprep.subr.bf16.mxu0 0
  %1473 = vmatpush1.bf16.msra.mxu0 %v988
  %1474 = vmatprep.subr.bf16.mxu0 0
  %1475 = vmatpush1.bf16.msra.mxu0 %v991
  %1476 = vmatprep.subr.bf16.mxu0 0
  %1477 = vmatpush1.bf16.msra.mxu0 %v994
  %1478 = vmatprep.subr.bf16.mxu0 0
  %1479 = vmatpush1.bf16.msra.mxu0 %v997
  %1480 = vmatprep.subr.bf16.mxu0 0
  %1481 = vmatpush1.bf16.msra.mxu0 %v1000
  %1482 = vmatprep.subr.bf16.mxu0 0
  %1483 = vmatpush1.bf16.msra.mxu0 %v1003
  %1484 = vmatprep.subr.bf16.mxu0 0
  %1485 = vmatpush1.bf16.msra.mxu0 %v1006
  %1486 = vmatprep.subr.bf16.mxu0 0
  %1487 = vmatpush1.bf16.msra.mxu0 %v1009
  %1488 = vmatprep.mubr.bf16.mxu0 %v297
  %1489 = vmatmul.mubr.bf16.gmra.mrb[0].mxu0 %v296
  %v1490 = vpop.f32.mrb[0].mxu0
  %v1491 = vadd.f32 %v1450, %v1490
  %v1492 = vpop.f32.mrb[0].mxu0
  %v1493 = vpop.f32.mrb[0].mxu0
  %v1494 = vadd.f32 %v1453, %v1493
  %v1495 = vpop.f32.mrb[0].mxu0
  %1496 = vdwg.mxu0
  %1497 = vmatprep.subr.bf16.mxu0 0
  %1498 = vmatpush1.bf16.msra.mxu0 %v1012
  %1499 = vmatprep.subr.bf16.mxu0 0
  %1500 = vmatpush1.bf16.msra.mxu0 %v1015
  %1501 = vmatprep.subr.bf16.mxu0 0
  %1502 = vmatpush1.bf16.msra.mxu0 %v1018
  %1503 = vmatprep.subr.bf16.mxu0 0
  %1504 = vmatpush1.bf16.msra.mxu0 %v1021
  %1505 = vmatprep.subr.bf16.mxu0 0
  %1506 = vmatpush1.bf16.msra.mxu0 %v1024
  %1507 = vmatprep.subr.bf16.mxu0 0
  %1508 = vmatpush1.bf16.msra.mxu0 %v1027
  %1509 = vmatprep.subr.bf16.mxu0 0
  %1510 = vmatpush1.bf16.msra.mxu0 %v1030
  %1511 = vmatprep.subr.bf16.mxu0 0
  %1512 = vmatpush1.bf16.msra.mxu0 %v1033
  %1513 = vmatprep.subr.bf16.mxu0 0
  %1514 = vmatpush1.bf16.msra.mxu0 0
  %1515 = vmatprep.subr.bf16.mxu0 0
  %1516 = vmatpush1.bf16.msra.mxu0 0
  %1517 = vmatprep.subr.bf16.mxu0 0
  %1518 = vmatpush1.bf16.msra.mxu0 0
  %1519 = vmatprep.subr.bf16.mxu0 0
  %1520 = vmatpush1.bf16.msra.mxu0 0
  %1521 = vmatprep.subr.bf16.mxu0 0
  %1522 = vmatpush1.bf16.msra.mxu0 0
  %1523 = vmatprep.subr.bf16.mxu0 0
  %1524 = vmatpush1.bf16.msra.mxu0 0
  %1525 = vmatprep.subr.bf16.mxu0 0
  %1526 = vmatpush1.bf16.msra.mxu0 0
  %1527 = vmatprep.subr.bf16.mxu0 0
  %1528 = vmatpush1.bf16.msra.mxu0 0
  %1529 = vmatprep.mubr.bf16.mxu0 0
  %1530 = vmatmul.mubr.bf16.gmra.mrb[0].mxu0 %v298
  %v1531 = vpop.f32.mrb[0].mxu0
  %v1532 = vadd.f32 %v1491, %v1531
  %v1533 = vpop.f32.mrb[0].mxu0
  %v1534 = vpop.f32.mrb[0].mxu0
  %v1535 = vadd.f32 %v1494, %v1534
  %v1536 = vpop.f32.mrb[0].mxu0
  %1537 = vdwg.mxu0
  %v1538 = vtanh.pop %v1366
  %v1539 = vtanh.pop %v1368
  %v1540 = vtanh.pop %v1532
  %v1541 = vtanh.pop %v1370
  %v1542 = vtanh.pop %v1372
  %v1543 = vtanh.pop %v1535
  %v1544 = vpack.c.bf16 %v1541, %v1538
  %v1545 = vpack.c.bf16 %v1542, %v1539
  %v1546 = vpack.c.bf16 %v1543, %v1540
  %v1547 = vld [vmem:[%s3] sm:$0xf]
  %v1548 = vld [vmem:[%s3 + $0x4] sm:$0xf]
  %v1549 = vld [vmem:[%s3 + $0x8] sm:$0xf]
  %v1550 = vld [vmem:[%s3 + $0xc] sm:$0xf]
  %v1551 = vld [vmem:[%s3 + $0x10] sm:$0xf]
  %v1552 = vld [vmem:[%s3 + $0x14] sm:$0xf]
  %v1553 = vld [vmem:[%s3 + $0x18] sm:$0xf]
  %v1554 = vld [vmem:[%s3 + $0x1c] sm:$0xf]
  %v1555 = vld [vmem:[%s3 + $0x20] sm:$0xf]
  %v1556 = vld [vmem:[%s3 + $0x24] sm:$0xf]
  %v1557 = vld [vmem:[%s3 + $0x28] sm:$0xf]
  %v1558 = vld [vmem:[%s3 + $0x2c] sm:$0xf]
  %v1559 = vld [vmem:[%s3 + $0x30] sm:$0xf]
  %v1560 = vld [vmem:[%s3 + $0x34] sm:$0xf]
  %v1561 = vld [vmem:[%s3 + $0x38] sm:$0xf]
  %v1562 = vld [vmem:[%s3 + $0x3c] sm:$0xf]
  %v1563 = vld [vmem:[%s3 + $0x40] sm:$0xf]
  %v1564 = vld [vmem:[%s3 + $0x44] sm:$0xf]
  %v1565 = vld [vmem:[%s3 + $0x48] sm:$0xf]
  %v1566 = vld [vmem:[%s3 + $0x4c] sm:$0xf]
  %v1567 = vld [vmem:[%s3 + $0x50] sm:$0xf]
  %v1568 = vld [vmem:[%s3 + $0x54] sm:$0xf]
  %v1569 = vld [vmem:[%s3 + $0x58] sm:$0xf]
  %v1570 = vld [vmem:[%s3 + $0x5c] sm:$0xf]
  %v1571 = vld [vmem:[%s3 + $0x60] sm:$0xf]
  %v1572 = vld [vmem:[%s3 + $0x64] sm:$0xf]
  %v1573 = vld [vmem:[%s3 + $0x68] sm:$0xf]
  %v1574 = vld [vmem:[%s3 + $0x6c] sm:$0xf]
  %v1575 = vld [vmem:[%s3 + $0x70] sm:$0xf]
  %v1576 = vld [vmem:[%s3 + $0x74] sm:$0xf]
  %v1577 = vld [vmem:[%s3 + $0x78] sm:$0xf]
  %v1578 = vld [vmem:[%s3 + $0x7c] sm:$0xf]
  %v1579 = vld [vmem:[%s3 + $0x80] sm:$0xf]
  %v1580 = vld [vmem:[%s3 + $0x84] sm:$0xf]
  %v1581 = vld [vmem:[%s3 + $0x88] sm:$0xf]
  %v1582 = vld [vmem:[%s3 + $0x8c] sm:$0xf]
  %v1583 = vld [vmem:[%s3 + $0x90] sm:$0xf]
  %v1584 = vld [vmem:[%s3 + $0x94] sm:$0xf]
  %v1585 = vld [vmem:[%s3 + $0x98] sm:$0xf]
  %v1586 = vld [vmem:[%s3 + $0x9c] sm:$0xf]
  %v1587 = vld [vmem:[%s3 + $0xa0] sm:$0xf]
  %v1588 = vld [vmem:[%s3 + $0xa4] sm:$0xf]
  %v1589 = vld [vmem:[%s3 + $0xa8] sm:$0xf]
  %v1590 = vld [vmem:[%s3 + $0xac] sm:$0xf]
  %v1591 = vld [vmem:[%s3 + $0xb0] sm:$0xf]
  %v1592 = vld [vmem:[%s3 + $0xb4] sm:$0xf]
  %v1593 = vld [vmem:[%s3 + $0xb8] sm:$0xf]
  %v1594 = vld [vmem:[%s3 + $0xbc] sm:$0xf]
  %v1595 = vld [vmem:[%s4] sm:$0x1]
  %v1597 = vlaneseq
  %v1598 = vshrl.u32 %v1597, 7
  %v1599 = vsub.s32 0, %v1598
  %v1600 = vrot.slane %v1595, %v1599
  %v1650 = vunpack.c.l.b16 %v1547
  %v1651 = vunpack.c.l.b16 %v1548
  %v1652 = vunpack.c.l.b16 %v1549
  %v1653 = vunpack.c.l.b16 %v1550
  %v1654 = vunpack.c.l.b16 %v1551
  %v1655 = vunpack.c.l.b16 %v1552
  %v1656 = vunpack.c.l.b16 %v1553
  %v1657 = vunpack.c.l.b16 %v1554
  %v1658 = vunpack.c.l.b16 %v1555
  %v1659 = vunpack.c.l.b16 %v1556
  %v1660 = vunpack.c.l.b16 %v1557
  %v1661 = vunpack.c.l.b16 %v1558
  %v1662 = vunpack.c.l.b16 %v1559
  %v1663 = vunpack.c.l.b16 %v1560
  %v1664 = vunpack.c.l.b16 %v1561
  %v1665 = vunpack.c.l.b16 %v1562
  %v1666 = vunpack.c.l.b16 %v1563
  %v1667 = vunpack.c.l.b16 %v1564
  %v1668 = vunpack.c.l.b16 %v1565
  %v1669 = vunpack.c.l.b16 %v1566
  %v1670 = vunpack.c.l.b16 %v1567
  %v1671 = vunpack.c.l.b16 %v1568
  %v1672 = vunpack.c.l.b16 %v1569
  %v1673 = vunpack.c.l.b16 %v1570
  %v1674 = vunpack.c.l.b16 %v1571
  %v1675 = vunpack.c.l.b16 %v1572
  %v1676 = vunpack.c.l.b16 %v1573
  %v1677 = vunpack.c.l.b16 %v1574
  %v1678 = vunpack.c.l.b16 %v1575
  %v1679 = vunpack.c.l.b16 %v1576
  %v1680 = vunpack.c.l.b16 %v1577
  %v1681 = vunpack.c.l.b16 %v1578
  %v1682 = vunpack.c.l.b16 %v1579
  %v1683 = vunpack.c.l.b16 %v1580
  %v1684 = vunpack.c.l.b16 %v1581
  %v1685 = vunpack.c.l.b16 %v1582
  %v1686 = vunpack.c.l.b16 %v1583
  %v1687 = vunpack.c.l.b16 %v1584
  %v1688 = vunpack.c.l.b16 %v1585
  %v1689 = vunpack.c.l.b16 %v1586
  %v1690 = vunpack.c.l.b16 %v1587
  %v1691 = vunpack.c.l.b16 %v1588
  %v1692 = vunpack.c.l.b16 %v1589
  %v1693 = vunpack.c.l.b16 %v1590
  %v1694 = vunpack.c.l.b16 %v1591
  %v1695 = vunpack.c.l.b16 %v1592
  %v1696 = vunpack.c.l.b16 %v1593
  %v1697 = vunpack.c.l.b16 %v1594
  %v1698 = vpack.c.b16 %v1651, %v1650
  %v1699 = vpack.c.b16 %v1653, %v1652
  %v1700 = vpack.c.b16 %v1655, %v1654
  %v1701 = vpack.c.b16 %v1657, %v1656
  %v1702 = vpack.c.b16 %v1659, %v1658
  %v1703 = vpack.c.b16 %v1661, %v1660
  %v1704 = vpack.c.b16 %v1663, %v1662
  %v1705 = vpack.c.b16 %v1665, %v1664
  %v1706 = vpack.c.b16 %v1667, %v1666
  %v1707 = vpack.c.b16 %v1669, %v1668
  %v1708 = vpack.c.b16 %v1671, %v1670
  %v1709 = vpack.c.b16 %v1673, %v1672
  %v1710 = vpack.c.b16 %v1675, %v1674
  %v1711 = vpack.c.b16 %v1677, %v1676
  %v1712 = vpack.c.b16 %v1679, %v1678
  %v1713 = vpack.c.b16 %v1681, %v1680
  %v1714 = vpack.c.b16 %v1683, %v1682
  %v1715 = vpack.c.b16 %v1685, %v1684
  %v1716 = vpack.c.b16 %v1687, %v1686
  %v1717 = vpack.c.b16 %v1689, %v1688
  %v1718 = vpack.c.b16 %v1691, %v1690
  %v1719 = vpack.c.b16 %v1693, %v1692
  %v1720 = vpack.c.b16 %v1695, %v1694
  %v1721 = vpack.c.b16 %v1697, %v1696
  %1746 = vmatprep.subr.bf16.mxu0 0
  %1747 = vmatpush1.bf16.msra.mxu0 %v1698
  %1748 = vmatprep.subr.bf16.mxu0 0
  %1749 = vmatpush1.bf16.msra.mxu0 %v1699
  %1750 = vmatprep.subr.bf16.mxu0 0
  %1751 = vmatpush1.bf16.msra.mxu0 %v1700
  %1752 = vmatprep.subr.bf16.mxu0 0
  %1753 = vmatpush1.bf16.msra.mxu0 %v1701
  %1754 = vmatprep.subr.bf16.mxu0 0
  %1755 = vmatpush1.bf16.msra.mxu0 %v1702
  %1756 = vmatprep.subr.bf16.mxu0 0
  %1757 = vmatpush1.bf16.msra.mxu0 %v1703
  %1758 = vmatprep.subr.bf16.mxu0 0
  %1759 = vmatpush1.bf16.msra.mxu0 %v1704
  %1760 = vmatprep.subr.bf16.mxu0 0
  %1761 = vmatpush1.bf16.msra.mxu0 %v1705
  %1762 = vmatprep.subr.bf16.mxu0 0
  %1763 = vmatpush1.bf16.msra.mxu0 %v1706
  %1764 = vmatprep.subr.bf16.mxu0 0
  %1765 = vmatpush1.bf16.msra.mxu0 %v1707
  %1766 = vmatprep.subr.bf16.mxu0 0
  %1767 = vmatpush1.bf16.msra.mxu0 %v1708
  %1768 = vmatprep.subr.bf16.mxu0 0
  %1769 = vmatpush1.bf16.msra.mxu0 %v1709
  %1770 = vmatprep.subr.bf16.mxu0 0
  %1771 = vmatpush1.bf16.msra.mxu0 %v1710
  %1772 = vmatprep.subr.bf16.mxu0 0
  %1773 = vmatpush1.bf16.msra.mxu0 %v1711
  %1774 = vmatprep.subr.bf16.mxu0 0
  %1775 = vmatpush1.bf16.msra.mxu0 %v1712
  %1776 = vmatprep.subr.bf16.mxu0 0
  %1777 = vmatpush1.bf16.msra.mxu0 %v1713
  %1778 = vmatprep.mubr.bf16.mxu0 %v1545
  %1779 = vmatmul.mubr.bf16.gmra.mrb[0].mxu0 %v1544
  %v1780 = vpop.f32.mrb[0].mxu0
  %v1781 = vadd.f32 %v1600, %v1780
  %v1782 = vpop.f32.mrb[0].mxu0
  %v1783 = vpop.f32.mrb[0].mxu0
  %v1784 = vadd.f32 %v1600, %v1783
  %v1785 = vpop.f32.mrb[0].mxu0
  %1786 = vdwg.mxu0
  %1787 = vmatprep.subr.bf16.mxu0 0
  %1788 = vmatpush1.bf16.msra.mxu0 %v1714
  %1789 = vmatprep.subr.bf16.mxu0 0
  %1790 = vmatpush1.bf16.msra.mxu0 %v1715
  %1791 = vmatprep.subr.bf16.mxu0 0
  %1792 = vmatpush1.bf16.msra.mxu0 %v1716
  %1793 = vmatprep.subr.bf16.mxu0 0
  %1794 = vmatpush1.bf16.msra.mxu0 %v1717
  %1795 = vmatprep.subr.bf16.mxu0 0
  %1796 = vmatpush1.bf16.msra.mxu0 %v1718
  %1797 = vmatprep.subr.bf16.mxu0 0
  %1798 = vmatpush1.bf16.msra.mxu0 %v1719
  %1799 = vmatprep.subr.bf16.mxu0 0
  %1800 = vmatpush1.bf16.msra.mxu0 %v1720
  %1801 = vmatprep.subr.bf16.mxu0 0
  %1802 = vmatpush1.bf16.msra.mxu0 %v1721
  %1803 = vmatprep.subr.bf16.mxu0 0
  %1804 = vmatpush1.bf16.msra.mxu0 0
  %1805 = vmatprep.subr.bf16.mxu0 0
  %1806 = vmatpush1.bf16.msra.mxu0 0
  %1807 = vmatprep.subr.bf16.mxu0 0
  %1808 = vmatpush1.bf16.msra.mxu0 0
  %1809 = vmatprep.subr.bf16.mxu0 0
  %1810 = vmatpush1.bf16.msra.mxu0 0
  %1811 = vmatprep.subr.bf16.mxu0 0
  %1812 = vmatpush1.bf16.msra.mxu0 0
  %1813 = vmatprep.subr.bf16.mxu0 0
  %1814 = vmatpush1.bf16.msra.mxu0 0
  %1815 = vmatprep.subr.bf16.mxu0 0
  %1816 = vmatpush1.bf16.msra.mxu0 0
  %1817 = vmatprep.subr.bf16.mxu0 0
  %1818 = vmatpush1.bf16.msra.mxu0 0
  %1819 = vmatprep.mubr.bf16.mxu0 0
  %1820 = vmatmul.mubr.bf16.gmra.mrb[0].mxu0 %v1546
  %v1821 = vpop.f32.mrb[0].mxu0
  %v1822 = vadd.f32 %v1781, %v1821
  %v1823 = vpop.f32.mrb[0].mxu0
  %v1824 = vpop.f32.mrb[0].mxu0
  %v1825 = vadd.f32 %v1784, %v1824
  %v1826 = vpop.f32.mrb[0].mxu0
  %1827 = vdwg.mxu0
  %1828 = vmax.xlane.f32.xlu0 %v1822
  %v1829 = vpop.xlane.xlu0 %1828
  %1830 = vmax.xlane.f32.xlu0 %v1825
  %v1831 = vpop.xlane.xlu0 %1830
  %v1832 = vsub.f32 %v1822, %v1829
  %v1833 = vsub.f32 %v1825, %v1831
  %v1834 = vmul.f32 %v1832, 1.442695
  %v1835 = vpow.pop %v1834
  %v1836 = vmul.f32 %v1833, 1.442695
  %v1837 = vpow.pop %v1836
  %1838 = vadd.xlane.f32.xlu0 %v1835
  %v1839 = vpop.xlane.xlu0 %1838
  %1840 = vadd.xlane.f32.xlu0 %v1837
  %v1841 = vpop.xlane.xlu0 %1840
  %v1842 = vlog2.pop %v1839
  %v1843 = vmul.f32 %v1842, 0.6931472
  %v1844 = vlog2.pop %v1841
  %v1845 = vmul.f32 %v1844, 0.6931472
  %v1846 = vsub.f32 %v1832, %v1843
  %v1847 = vsub.f32 %v1833, %v1845
  %1848 = vst [vmem:[%s5] sm:$0xff] %v1846
  %1849 = vst [vmem:[%s5 + $0x8] sm:$0xff] %v1847
  // Predicated region
  $region22: #{netfull_forward.1} parent=0 // pred_check
    _
  $region23: #{netfull_forward.1} parent=0 // pred_check_branch
    %1851 = sbr.rel (0) target = $region25
  $region24: #{netfull_forward.1} parent=0 // pred_region
    _
  $region25: #{netfull_forward.1} parent=0 // pred_fallthru
    _
  // Predicated region
  $region26: #{netfull_forward.1} parent=0 // pred_check
    _
  $region27: #{netfull_forward.1} parent=0 // pred_check_branch
    %1853 = sbr.rel (0) target = $region29
  $region28: #{netfull_forward.1} parent=0 // pred_region
    _
  $region29: #{netfull_forward.1} parent=0 // pred_fallthru
    _

</llo_original>
